<compile_context>
chip_gen: v7x
topology: tpu7x:2x2x1
jax: 0.10.0
libtpu: 0.0.40
codegen_flags: <defaults>
</compile_context>

<pallas_src>
import functools

import jax
import jax.numpy as jnp
from jax.experimental import pallas as pl
from jax.experimental.pallas import tpu as pltpu

KS = 3                      # Encoder conv kernel size
ACT_DTYPE = jnp.bfloat16    # MXU input dtype (accumulation is f32)


# ---------------------------------------------------------------------------
# Fused Encoder kernel: one batch element per grid step, all layers in VMEM.
# ---------------------------------------------------------------------------
def _encoder_kernel(p1_ref, wc1_ref, w234_ref, bias_ref,   # inputs
                    o_ref,                                   # output
                    canvas, pbuf,                            # VMEM scratch
                    *, ho, wo, cout):
    m = ho * wo
    biases = bias_ref[...]                                   # (5, cout) f32
    b1 = biases[0].reshape(1, 1, cout)
    bd = biases[1].reshape(1, 1, cout)
    b2 = biases[2].reshape(1, 1, cout)
    b3 = biases[3].reshape(1, 1, cout)
    b4 = biases[4].reshape(1, 1, cout)

    # Zero the 1-px-border canvas (a few KB).  Unconditional so it is correct
    # even when the "parallel" batch axis is sharded across TensorCores.
    canvas[...] = jnp.zeros_like(canvas)

    # -- block1.conv1 (3x3, s2) + block1.downsample (1x1, s2), fused ----------
    # Both consume the same im2col LHS (built host-side, bf16, K = 9*cin); the
    # downsample weight lives in the extra cout columns of wc1 -> ONE dot.
    y = jnp.dot(p1_ref[...], wc1_ref[...],
                preferred_element_type=jnp.float32).reshape(ho, wo, 2 * cout)
    out1 = jnp.maximum(y[:, :, :cout] + b1, 0.0)             # conv1+bn1+relu
    res1 = y[:, :, cout:] + bd                                # downsample+bn

    def conv3x3_s1(act, w_packed):
        """3x3 / stride-1 / pad-1 conv as ONE dot with taps folded into K."""
        canvas[1:1 + ho, 1:1 + wo, :] = act                  # interior only
        for kh in range(KS):
            for kw in range(KS):
                t = kh * KS + kw
                # contiguous window copy, no strided reshape of the canvas
                pbuf[:, :, t * cout:(t + 1) * cout] = canvas[kh:kh + ho,
                                                             kw:kw + wo, :]
        lhs = pbuf[...].reshape(m, KS * KS * cout).astype(ACT_DTYPE)
        return jnp.dot(lhs, w_packed,
                       preferred_element_type=jnp.float32).reshape(ho, wo, cout)

    # -- block1.conv2 + bn2 + residual add + relu -----------------------------
    blk1 = jnp.maximum(conv3x3_s1(out1, w234_ref[0]) + b2 + res1, 0.0)
    # -- block2.conv1 + bn1 + relu --------------------------------------------
    out3 = jnp.maximum(conv3x3_s1(blk1, w234_ref[1]) + b3, 0.0)
    # -- block2.conv2 + bn2 + identity residual + relu ------------------------
    o_ref[...] = jnp.maximum(conv3x3_s1(out3, w234_ref[2]) + b4 + blk1, 0.0)


# ---------------------------------------------------------------------------
# Host-side parameter packing (one-time constant transforms) and the wrapper.
# ---------------------------------------------------------------------------
def _fold_weight(w, scale):
    """Fold the eval-mode BN scale into the conv weight (HWIO)."""
    return w * scale.reshape(1, 1, 1, -1)


def encoder_forward(x, p1, p2, *, stride, padding):
    """x: (N, H, W, Cin) f32 NHWC; returns (N, H/stride, W/stride, Cout) f32."""
    n, h, w_, cin = x.shape
    cout = p1["w1"].shape[-1]
    assert stride == 2 and padding == 1 and p1["w1"].shape[:2] == (KS, KS)
    assert h % stride == 0 and w_ % stride == 0
    ho, wo = h // stride, w_ // stride
    m = ho * wo

    # BN-folded, tap-folded (K = 9*Cin), compact, bf16 weights.
    w1 = _fold_weight(p1["w1"], p1["s1"]).reshape(KS * KS * cin, cout)
    wd = _fold_weight(p1["wd"], p1["sd"]).reshape(cin, cout)
    # Embed the 1x1 downsample weight at tap (1,1) rows so it can share conv1's
    # im2col LHS; fuse along the output-column dim -> one (9*cin, 2*cout) dot.
    wd_e = jnp.zeros((KS * KS * cin, cout), jnp.float32).at[4 * cin:5 * cin].set(wd)
    wc1 = jnp.concatenate([w1, wd_e], axis=1).astype(ACT_DTYPE)      # (9cin, 2cout)
    w234 = jnp.stack(
        [_fold_weight(p1["w2"], p1["s2"]).reshape(KS * KS * cout, cout),
         _fold_weight(p2["w1"], p2["s1"]).reshape(KS * KS * cout, cout),
         _fold_weight(p2["w2"], p2["s2"]).reshape(KS * KS * cout, cout)],
        axis=0).astype(ACT_DTYPE)                                    # (3, 9cout, cout)
    biases = jnp.stack([p1["b1"], p1["bd"], p1["b2"], p2["b1"], p2["b2"]],
                       axis=0).astype(jnp.float32)                   # (5, cout)

    # im2col patches for the stride-2 conv1 (tiny, compact channels, bf16).
    xp = jnp.pad(x, ((0, 0), (padding, padding), (padding, padding), (0, 0)))
    cols = [xp[:, kh:kh + stride * ho:stride, kw:kw + stride * wo:stride, :]
            for kh in range(KS) for kw in range(KS)]
    patches1 = jnp.concatenate(cols, axis=-1).reshape(n, m, KS * KS * cin)
    patches1 = patches1.astype(ACT_DTYPE)

    out = pl.pallas_call(
        functools.partial(_encoder_kernel, ho=ho, wo=wo, cout=cout),
        out_shape=jax.ShapeDtypeStruct((n, ho, wo, cout), jnp.float32),
        grid=(n,),
        in_specs=[
            pl.BlockSpec((None, m, KS * KS * cin), lambda b: (b, 0, 0)),
            pl.BlockSpec((KS * KS * cin, 2 * cout), lambda b: (0, 0)),
            pl.BlockSpec((3, KS * KS * cout, cout), lambda b: (0, 0, 0)),
            pl.BlockSpec((5, cout), lambda b: (0, 0)),
        ],
        out_specs=pl.BlockSpec((None, ho, wo, cout), lambda b: (b, 0, 0, 0)),
        scratch_shapes=[
            pltpu.VMEM((ho + 2, wo + 2, cout), jnp.float32),      # padded canvas
            pltpu.VMEM((ho, wo, KS * KS * cout), jnp.float32),    # im2col patches
        ],
        compiler_params=pltpu.CompilerParams(
            dimension_semantics=("parallel",)),   # shards batch over v7x's 2 TCs
    )(patches1, wc1, w234, biases)
    return out


# ---------------------------------------------------------------------------
# Deterministic parameter construction (synthetic, no checkpoint)
# ---------------------------------------------------------------------------
def _bn_fold(k, c):
    k1, k2, k3, k4 = jax.random.split(k, 4)
    gamma = 1.0 + 0.1 * jax.random.normal(k1, (c,), jnp.float32)
    beta = 0.1 * jax.random.normal(k2, (c,), jnp.float32)
    mean = 0.1 * jax.random.normal(k3, (c,), jnp.float32)
    var = jnp.abs(jax.random.normal(k4, (c,), jnp.float32)) + 0.5
    scale = gamma / jnp.sqrt(var + 1e-5)
    bias = beta - mean * scale
    return scale, bias


def make_block_params(key, cin, cout, k, stride):
    ks = jax.random.split(key, 6)
    p = {}
    p["w1"] = 0.1 * jax.random.normal(ks[0], (k, k, cin, cout), jnp.float32)
    p["s1"], p["b1"] = _bn_fold(ks[1], cout)
    p["w2"] = 0.1 * jax.random.normal(ks[2], (k, k, cout, cout), jnp.float32)
    p["s2"], p["b2"] = _bn_fold(ks[3], cout)
    if stride > 1:
        p["wd"] = 0.1 * jax.random.normal(ks[4], (1, 1, cin, cout), jnp.float32)
        p["sd"], p["bd"] = _bn_fold(ks[5], cout)
    return p


# ---------------------------------------------------------------------------
# Pure-JAX reference (bf16-matched: same folded weights, bf16 conv inputs,
# f32 accumulation) for the correctness check.
# ---------------------------------------------------------------------------
def _ref_layer(act, w_folded, bias, *, stride, padding, relu, residual=None):
    y = jax.lax.conv_general_dilated(
        act.astype(ACT_DTYPE), w_folded.astype(ACT_DTYPE),
        window_strides=(stride, stride),
        padding=[(padding, padding), (padding, padding)],
        dimension_numbers=("NHWC", "HWIO", "NHWC"),
        preferred_element_type=jnp.float32)
    y = y + bias.reshape(1, 1, 1, -1)
    if residual is not None:
        y = y + residual
    if relu:
        y = jnp.maximum(y, 0.0)
    return y


def _ref_block(x, p, stride, padding):
    out = _ref_layer(x, _fold_weight(p["w1"], p["s1"]), p["b1"],
                     stride=stride, padding=padding, relu=True)
    if stride > 1:
        residual = _ref_layer(x, _fold_weight(p["wd"], p["sd"]), p["bd"],
                              stride=stride, padding=0, relu=False)
    else:
        residual = x
    return _ref_layer(out, _fold_weight(p["w2"], p["s2"]), p["b2"],
                      stride=1, padding=padding, relu=True, residual=residual)


def _ref_encoder(x, p1, p2, stride, padding):
    return _ref_block(_ref_block(x, p1, stride, padding), p2, 1, padding)


# ---------------------------------------------------------------------------
if __name__ == "__main__":
    key = jax.random.PRNGKey(0)
    kx, kp1, kp2 = jax.random.split(key, 3)

    # Encoder(in_planes=4, out_planes=8, kernel_size=3, stride=2, padding=1)
    N, Cin, H, W = 2, 4, 16, 16
    Cout, STRIDE, PAD = 8, 2, 1

    x_nchw = jax.random.normal(kx, (N, Cin, H, W), jnp.float32)
    x = jnp.transpose(x_nchw, (0, 2, 3, 1))   # NCHW -> NHWC

    p1 = make_block_params(kp1, Cin, Cout, KS, stride=STRIDE)
    p2 = make_block_params(kp2, Cout, Cout, KS, stride=1)

    fwd = jax.jit(functools.partial(encoder_forward, stride=STRIDE, padding=PAD))
    y = jax.block_until_ready(fwd(x, p1, p2))

    y_ref = _ref_encoder(x, p1, p2, STRIDE, PAD)
    assert y.shape == (N, H // STRIDE, W // STRIDE, Cout), y.shape
    assert jnp.allclose(y, y_ref, atol=1e-2, rtol=1e-2), \
        float(jnp.max(jnp.abs(y - y_ref)))

    print("KERNEL_OK")
</pallas_src>

<mosaic_0001>
module attributes {stable_mosaic.version = 11 : i64} {
  func.func @_encoder_kernel(%arg0: i32, %arg1: memref<1x64x36xbf16, #tpu.memory_space<vmem>>, %arg2: memref<36x16xbf16, #tpu.memory_space<vmem>>, %arg3: memref<3x72x8xbf16, #tpu.memory_space<vmem>>, %arg4: memref<5x8xf32, #tpu.memory_space<vmem>>, %arg5: memref<1x8x8x8xf32, #tpu.memory_space<vmem>>, %arg6: memref<10x10x8xf32, #tpu.memory_space<vmem>>, %arg7: memref<8x8x72xf32, #tpu.memory_space<vmem>>) attributes {dimension_semantics = [#tpu.dimension_semantics<parallel>], iteration_bounds = array<i64: 2>, scalar_prefetch = 0 : i64, scratch_operands = 2 : i64, tpu.core_type = #tpu.core_type<tc>, window_params = [{transform_indices = @transform_0, window_bounds = array<i64: 1, 64, 36>}, {pipeline_mode = #tpu.pipeline_mode<synchronous>, transform_indices = @transform_1, window_bounds = array<i64: 36, 16>}, {pipeline_mode = #tpu.pipeline_mode<synchronous>, transform_indices = @transform_2, window_bounds = array<i64: 3, 72, 8>}, {pipeline_mode = #tpu.pipeline_mode<synchronous>, transform_indices = @transform_3, window_bounds = array<i64: 5, 8>}, {transform_indices = @transform_4, window_bounds = array<i64: 1, 8, 8, 8>}]} {
    %c0 = arith.constant 0 : index
    %c0_0 = arith.constant 0 : index
    %0 = vector.load %arg4[%c0, %c0_0] : memref<5x8xf32, #tpu.memory_space<vmem>>, vector<5x8xf32>
    %1 = vector.extract_strided_slice %0 {offsets = [0, 0], sizes = [1, 8], strides = [1, 1]} : vector<5x8xf32> to vector<1x8xf32>
    %2 = vector.shape_cast %1 : vector<1x8xf32> to vector<8xf32>
    %3 = vector.shape_cast %2 : vector<8xf32> to vector<1x1x8xf32>
    %4 = vector.extract_strided_slice %0 {offsets = [1, 0], sizes = [1, 8], strides = [1, 1]} : vector<5x8xf32> to vector<1x8xf32>
    %5 = vector.shape_cast %4 : vector<1x8xf32> to vector<8xf32>
    %6 = vector.shape_cast %5 : vector<8xf32> to vector<1x1x8xf32>
    %7 = vector.extract_strided_slice %0 {offsets = [2, 0], sizes = [1, 8], strides = [1, 1]} : vector<5x8xf32> to vector<1x8xf32>
    %8 = vector.shape_cast %7 : vector<1x8xf32> to vector<8xf32>
    %9 = vector.shape_cast %8 : vector<8xf32> to vector<1x1x8xf32>
    %10 = vector.extract_strided_slice %0 {offsets = [3, 0], sizes = [1, 8], strides = [1, 1]} : vector<5x8xf32> to vector<1x8xf32>
    %11 = vector.shape_cast %10 : vector<1x8xf32> to vector<8xf32>
    %12 = vector.shape_cast %11 : vector<8xf32> to vector<1x1x8xf32>
    %13 = vector.extract_strided_slice %0 {offsets = [4, 0], sizes = [1, 8], strides = [1, 1]} : vector<5x8xf32> to vector<1x8xf32>
    %14 = vector.shape_cast %13 : vector<1x8xf32> to vector<8xf32>
    %15 = vector.shape_cast %14 : vector<8xf32> to vector<1x1x8xf32>
    %cst = arith.constant 0.000000e+00 : f32
    %16 = vector.broadcast %cst : f32 to vector<10x10x8xf32>
    %c0_1 = arith.constant 0 : index
    %c0_2 = arith.constant 0 : index
    %c0_3 = arith.constant 0 : index
    %17 = vector.load %arg6[%c0_1, %c0_2, %c0_3] : memref<10x10x8xf32, #tpu.memory_space<vmem>>, vector<10x10x8xf32>
    tpu.vector_store %arg6[%c0_1, %c0_2, %c0_3], %16 {strides = array<i32>} : memref<10x10x8xf32, #tpu.memory_space<vmem>>, vector<10x10x8xf32>,
    %c0_4 = arith.constant 0 : index
    %c0_5 = arith.constant 0 : index
    %c0_6 = arith.constant 0 : index
    %18 = vector.load %arg1[%c0_4, %c0_5, %c0_6] : memref<1x64x36xbf16, #tpu.memory_space<vmem>>, vector<1x64x36xbf16>
    %19 = vector.shape_cast %18 : vector<1x64x36xbf16> to vector<64x36xbf16>
    %c0_7 = arith.constant 0 : index
    %c0_8 = arith.constant 0 : index
    %20 = vector.load %arg2[%c0_7, %c0_8] : memref<36x16xbf16, #tpu.memory_space<vmem>>, vector<36x16xbf16>
    %cst_9 = arith.constant dense<0.000000e+00> : vector<64x16xf32>
    %21 = tpu.matmul %19, %20, %cst_9 {dimension_numbers = #tpu.dot_dimension_numbers<[1], [0], [0], [1], [0, 0, 1, 1], [], []>} : vector<64x36xbf16>, vector<36x16xbf16>, vector<64x16xf32> -> vector<64x16xf32>
    %22 = vector.shape_cast %21 : vector<64x16xf32> to vector<8x8x16xf32>
    %23 = vector.extract_strided_slice %22 {offsets = [0, 0, 0], sizes = [8, 8, 8], strides = [1, 1, 1]} : vector<8x8x16xf32> to vector<8x8x8xf32>
    %24 = vector.broadcast %3 : vector<1x1x8xf32> to vector<8x8x8xf32>
    %25 = arith.addf %23, %24 : vector<8x8x8xf32>
    %cst_10 = arith.constant 0.000000e+00 : f32
    %26 = vector.broadcast %cst_10 : f32 to vector<8x8x8xf32>
    %27 = arith.maximumf %25, %26 : vector<8x8x8xf32>
    %28 = vector.extract_strided_slice %22 {offsets = [0, 0, 8], sizes = [8, 8, 8], strides = [1, 1, 1]} : vector<8x8x16xf32> to vector<8x8x8xf32>
    %29 = vector.broadcast %6 : vector<1x1x8xf32> to vector<8x8x8xf32>
    %30 = arith.addf %28, %29 : vector<8x8x8xf32>
    %c0_11 = arith.constant 0 : index
    %c0_12 = arith.constant 0 : index
    %c0_13 = arith.constant 0 : index
    %31 = vector.load %arg3[%c0_11, %c0_12, %c0_13] : memref<3x72x8xbf16, #tpu.memory_space<vmem>>, vector<1x72x8xbf16>
    %32 = vector.shape_cast %31 : vector<1x72x8xbf16> to vector<72x8xbf16>
    %c1 = arith.constant 1 : index
    %c1_14 = arith.constant 1 : index
    %c0_15 = arith.constant 0 : index
    %33 = vector.load %arg6[%c1, %c1_14, %c0_15] : memref<10x10x8xf32, #tpu.memory_space<vmem>>, vector<8x8x8xf32>
    tpu.vector_store %arg6[%c1, %c1_14, %c0_15], %27 {strides = array<i32>} : memref<10x10x8xf32, #tpu.memory_space<vmem>>, vector<8x8x8xf32>,
    %c0_16 = arith.constant 0 : index
    %c0_17 = arith.constant 0 : index
    %c0_18 = arith.constant 0 : index
    %34 = vector.load %arg6[%c0_16, %c0_17, %c0_18] : memref<10x10x8xf32, #tpu.memory_space<vmem>>, vector<8x8x8xf32>
    %c0_19 = arith.constant 0 : index
    %c0_20 = arith.constant 0 : index
    %c0_21 = arith.constant 0 : index
    %35 = vector.load %arg7[%c0_19, %c0_20, %c0_21] : memref<8x8x72xf32, #tpu.memory_space<vmem>>, vector<8x8x8xf32>
    tpu.vector_store %arg7[%c0_19, %c0_20, %c0_21], %34 {strides = array<i32>} : memref<8x8x72xf32, #tpu.memory_space<vmem>>, vector<8x8x8xf32>,
    %c0_22 = arith.constant 0 : index
    %c1_23 = arith.constant 1 : index
    %c0_24 = arith.constant 0 : index
    %36 = vector.load %arg6[%c0_22, %c1_23, %c0_24] : memref<10x10x8xf32, #tpu.memory_space<vmem>>, vector<8x8x8xf32>
    %c0_25 = arith.constant 0 : index
    %c0_26 = arith.constant 0 : index
    %c8 = arith.constant 8 : index
    %37 = vector.load %arg7[%c0_25, %c0_26, %c8] : memref<8x8x72xf32, #tpu.memory_space<vmem>>, vector<8x8x8xf32>
    tpu.vector_store %arg7[%c0_25, %c0_26, %c8], %36 {strides = array<i32>} : memref<8x8x72xf32, #tpu.memory_space<vmem>>, vector<8x8x8xf32>,
    %c0_27 = arith.constant 0 : index
    %c2 = arith.constant 2 : index
    %c0_28 = arith.constant 0 : index
    %38 = vector.load %arg6[%c0_27, %c2, %c0_28] : memref<10x10x8xf32, #tpu.memory_space<vmem>>, vector<8x8x8xf32>
    %c0_29 = arith.constant 0 : index
    %c0_30 = arith.constant 0 : index
    %c16 = arith.constant 16 : index
    %39 = vector.load %arg7[%c0_29, %c0_30, %c16] : memref<8x8x72xf32, #tpu.memory_space<vmem>>, vector<8x8x8xf32>
    tpu.vector_store %arg7[%c0_29, %c0_30, %c16], %38 {strides = array<i32>} : memref<8x8x72xf32, #tpu.memory_space<vmem>>, vector<8x8x8xf32>,
    %c1_31 = arith.constant 1 : index
    %c0_32 = arith.constant 0 : index
    %c0_33 = arith.constant 0 : index
    %40 = vector.load %arg6[%c1_31, %c0_32, %c0_33] : memref<10x10x8xf32, #tpu.memory_space<vmem>>, vector<8x8x8xf32>
    %c0_34 = arith.constant 0 : index
    %c0_35 = arith.constant 0 : index
    %c24 = arith.constant 24 : index
    %41 = vector.load %arg7[%c0_34, %c0_35, %c24] : memref<8x8x72xf32, #tpu.memory_space<vmem>>, vector<8x8x8xf32>
    tpu.vector_store %arg7[%c0_34, %c0_35, %c24], %40 {strides = array<i32>} : memref<8x8x72xf32, #tpu.memory_space<vmem>>, vector<8x8x8xf32>,
    %c1_36 = arith.constant 1 : index
    %c1_37 = arith.constant 1 : index
    %c0_38 = arith.constant 0 : index
    %42 = vector.load %arg6[%c1_36, %c1_37, %c0_38] : memref<10x10x8xf32, #tpu.memory_space<vmem>>, vector<8x8x8xf32>
    %c0_39 = arith.constant 0 : index
    %c0_40 = arith.constant 0 : index
    %c32 = arith.constant 32 : index
    %43 = vector.load %arg7[%c0_39, %c0_40, %c32] : memref<8x8x72xf32, #tpu.memory_space<vmem>>, vector<8x8x8xf32>
    tpu.vector_store %arg7[%c0_39, %c0_40, %c32], %42 {strides = array<i32>} : memref<8x8x72xf32, #tpu.memory_space<vmem>>, vector<8x8x8xf32>,
    %c1_41 = arith.constant 1 : index
    %c2_42 = arith.constant 2 : index
    %c0_43 = arith.constant 0 : index
    %44 = vector.load %arg6[%c1_41, %c2_42, %c0_43] : memref<10x10x8xf32, #tpu.memory_space<vmem>>, vector<8x8x8xf32>
    %c0_44 = arith.constant 0 : index
    %c0_45 = arith.constant 0 : index
    %c40 = arith.constant 40 : index
    %45 = vector.load %arg7[%c0_44, %c0_45, %c40] : memref<8x8x72xf32, #tpu.memory_space<vmem>>, vector<8x8x8xf32>
    tpu.vector_store %arg7[%c0_44, %c0_45, %c40], %44 {strides = array<i32>} : memref<8x8x72xf32, #tpu.memory_space<vmem>>, vector<8x8x8xf32>,
    %c2_46 = arith.constant 2 : index
    %c0_47 = arith.constant 0 : index
    %c0_48 = arith.constant 0 : index
    %46 = vector.load %arg6[%c2_46, %c0_47, %c0_48] : memref<10x10x8xf32, #tpu.memory_space<vmem>>, vector<8x8x8xf32>
    %c0_49 = arith.constant 0 : index
    %c0_50 = arith.constant 0 : index
    %c48 = arith.constant 48 : index
    %47 = vector.load %arg7[%c0_49, %c0_50, %c48] : memref<8x8x72xf32, #tpu.memory_space<vmem>>, vector<8x8x8xf32>
    tpu.vector_store %arg7[%c0_49, %c0_50, %c48], %46 {strides = array<i32>} : memref<8x8x72xf32, #tpu.memory_space<vmem>>, vector<8x8x8xf32>,
    %c2_51 = arith.constant 2 : index
    %c1_52 = arith.constant 1 : index
    %c0_53 = arith.constant 0 : index
    %48 = vector.load %arg6[%c2_51, %c1_52, %c0_53] : memref<10x10x8xf32, #tpu.memory_space<vmem>>, vector<8x8x8xf32>
    %c0_54 = arith.constant 0 : index
    %c0_55 = arith.constant 0 : index
    %c56 = arith.constant 56 : index
    %49 = vector.load %arg7[%c0_54, %c0_55, %c56] : memref<8x8x72xf32, #tpu.memory_space<vmem>>, vector<8x8x8xf32>
    tpu.vector_store %arg7[%c0_54, %c0_55, %c56], %48 {strides = array<i32>} : memref<8x8x72xf32, #tpu.memory_space<vmem>>, vector<8x8x8xf32>,
    %c2_56 = arith.constant 2 : index
    %c2_57 = arith.constant 2 : index
    %c0_58 = arith.constant 0 : index
    %50 = vector.load %arg6[%c2_56, %c2_57, %c0_58] : memref<10x10x8xf32, #tpu.memory_space<vmem>>, vector<8x8x8xf32>
    %c0_59 = arith.constant 0 : index
    %c0_60 = arith.constant 0 : index
    %c64 = arith.constant 64 : index
    %51 = vector.load %arg7[%c0_59, %c0_60, %c64] : memref<8x8x72xf32, #tpu.memory_space<vmem>>, vector<8x8x8xf32>
    tpu.vector_store %arg7[%c0_59, %c0_60, %c64], %50 {strides = array<i32>} : memref<8x8x72xf32, #tpu.memory_space<vmem>>, vector<8x8x8xf32>,
    %c0_61 = arith.constant 0 : index
    %c0_62 = arith.constant 0 : index
    %c0_63 = arith.constant 0 : index
    %52 = vector.load %arg7[%c0_61, %c0_62, %c0_63] : memref<8x8x72xf32, #tpu.memory_space<vmem>>, vector<8x8x72xf32>
    %53 = vector.shape_cast %52 : vector<8x8x72xf32> to vector<64x72xf32>
    %54 = arith.truncf %53 : vector<64x72xf32> to vector<64x72xbf16>
    %cst_64 = arith.constant dense<0.000000e+00> : vector<64x8xf32>
    %55 = tpu.matmul %54, %32, %cst_64 {dimension_numbers = #tpu.dot_dimension_numbers<[1], [0], [0], [1], [0, 0, 1, 1], [], []>} : vector<64x72xbf16>, vector<72x8xbf16>, vector<64x8xf32> -> vector<64x8xf32>
    %56 = vector.shape_cast %55 : vector<64x8xf32> to vector<8x8x8xf32>
    %57 = vector.broadcast %9 : vector<1x1x8xf32> to vector<8x8x8xf32>
    %58 = arith.addf %56, %57 : vector<8x8x8xf32>
    %59 = arith.addf %58, %30 : vector<8x8x8xf32>
    %cst_65 = arith.constant 0.000000e+00 : f32
    %60 = vector.broadcast %cst_65 : f32 to vector<8x8x8xf32>
    %61 = arith.maximumf %59, %60 : vector<8x8x8xf32>
    %c1_66 = arith.constant 1 : index
    %c0_67 = arith.constant 0 : index
    %c0_68 = arith.constant 0 : index
    %62 = vector.load %arg3[%c1_66, %c0_67, %c0_68] : memref<3x72x8xbf16, #tpu.memory_space<vmem>>, vector<1x72x8xbf16>
    %63 = vector.shape_cast %62 : vector<1x72x8xbf16> to vector<72x8xbf16>
    %c1_69 = arith.constant 1 : index
    %c1_70 = arith.constant 1 : index
    %c0_71 = arith.constant 0 : index
    %64 = vector.load %arg6[%c1_69, %c1_70, %c0_71] : memref<10x10x8xf32, #tpu.memory_space<vmem>>, vector<8x8x8xf32>
    tpu.vector_store %arg6[%c1_69, %c1_70, %c0_71], %61 {strides = array<i32>} : memref<10x10x8xf32, #tpu.memory_space<vmem>>, vector<8x8x8xf32>,
    %c0_72 = arith.constant 0 : index
    %c0_73 = arith.constant 0 : index
    %c0_74 = arith.constant 0 : index
    %65 = vector.load %arg6[%c0_72, %c0_73, %c0_74] : memref<10x10x8xf32, #tpu.memory_space<vmem>>, vector<8x8x8xf32>
    %c0_75 = arith.constant 0 : index
    %c0_76 = arith.constant 0 : index
    %c0_77 = arith.constant 0 : index
    %66 = vector.load %arg7[%c0_75, %c0_76, %c0_77] : memref<8x8x72xf32, #tpu.memory_space<vmem>>, vector<8x8x8xf32>
    tpu.vector_store %arg7[%c0_75, %c0_76, %c0_77], %65 {strides = array<i32>} : memref<8x8x72xf32, #tpu.memory_space<vmem>>, vector<8x8x8xf32>,
    %c0_78 = arith.constant 0 : index
    %c1_79 = arith.constant 1 : index
    %c0_80 = arith.constant 0 : index
    %67 = vector.load %arg6[%c0_78, %c1_79, %c0_80] : memref<10x10x8xf32, #tpu.memory_space<vmem>>, vector<8x8x8xf32>
    %c0_81 = arith.constant 0 : index
    %c0_82 = arith.constant 0 : index
    %c8_83 = arith.constant 8 : index
    %68 = vector.load %arg7[%c0_81, %c0_82, %c8_83] : memref<8x8x72xf32, #tpu.memory_space<vmem>>, vector<8x8x8xf32>
    tpu.vector_store %arg7[%c0_81, %c0_82, %c8_83], %67 {strides = array<i32>} : memref<8x8x72xf32, #tpu.memory_space<vmem>>, vector<8x8x8xf32>,
    %c0_84 = arith.constant 0 : index
    %c2_85 = arith.constant 2 : index
    %c0_86 = arith.constant 0 : index
    %69 = vector.load %arg6[%c0_84, %c2_85, %c0_86] : memref<10x10x8xf32, #tpu.memory_space<vmem>>, vector<8x8x8xf32>
    %c0_87 = arith.constant 0 : index
    %c0_88 = arith.constant 0 : index
    %c16_89 = arith.constant 16 : index
    %70 = vector.load %arg7[%c0_87, %c0_88, %c16_89] : memref<8x8x72xf32, #tpu.memory_space<vmem>>, vector<8x8x8xf32>
    tpu.vector_store %arg7[%c0_87, %c0_88, %c16_89], %69 {strides = array<i32>} : memref<8x8x72xf32, #tpu.memory_space<vmem>>, vector<8x8x8xf32>,
    %c1_90 = arith.constant 1 : index
    %c0_91 = arith.constant 0 : index
    %c0_92 = arith.constant 0 : index
    %71 = vector.load %arg6[%c1_90, %c0_91, %c0_92] : memref<10x10x8xf32, #tpu.memory_space<vmem>>, vector<8x8x8xf32>
    %c0_93 = arith.constant 0 : index
    %c0_94 = arith.constant 0 : index
    %c24_95 = arith.constant 24 : index
    %72 = vector.load %arg7[%c0_93, %c0_94, %c24_95] : memref<8x8x72xf32, #tpu.memory_space<vmem>>, vector<8x8x8xf32>
    tpu.vector_store %arg7[%c0_93, %c0_94, %c24_95], %71 {strides = array<i32>} : memref<8x8x72xf32, #tpu.memory_space<vmem>>, vector<8x8x8xf32>,
    %c1_96 = arith.constant 1 : index
    %c1_97 = arith.constant 1 : index
    %c0_98 = arith.constant 0 : index
    %73 = vector.load %arg6[%c1_96, %c1_97, %c0_98] : memref<10x10x8xf32, #tpu.memory_space<vmem>>, vector<8x8x8xf32>
    %c0_99 = arith.constant 0 : index
    %c0_100 = arith.constant 0 : index
    %c32_101 = arith.constant 32 : index
    %74 = vector.load %arg7[%c0_99, %c0_100, %c32_101] : memref<8x8x72xf32, #tpu.memory_space<vmem>>, vector<8x8x8xf32>
    tpu.vector_store %arg7[%c0_99, %c0_100, %c32_101], %73 {strides = array<i32>} : memref<8x8x72xf32, #tpu.memory_space<vmem>>, vector<8x8x8xf32>,
    %c1_102 = arith.constant 1 : index
    %c2_103 = arith.constant 2 : index
    %c0_104 = arith.constant 0 : index
    %75 = vector.load %arg6[%c1_102, %c2_103, %c0_104] : memref<10x10x8xf32, #tpu.memory_space<vmem>>, vector<8x8x8xf32>
    %c0_105 = arith.constant 0 : index
    %c0_106 = arith.constant 0 : index
    %c40_107 = arith.constant 40 : index
    %76 = vector.load %arg7[%c0_105, %c0_106, %c40_107] : memref<8x8x72xf32, #tpu.memory_space<vmem>>, vector<8x8x8xf32>
    tpu.vector_store %arg7[%c0_105, %c0_106, %c40_107], %75 {strides = array<i32>} : memref<8x8x72xf32, #tpu.memory_space<vmem>>, vector<8x8x8xf32>,
    %c2_108 = arith.constant 2 : index
    %c0_109 = arith.constant 0 : index
    %c0_110 = arith.constant 0 : index
    %77 = vector.load %arg6[%c2_108, %c0_109, %c0_110] : memref<10x10x8xf32, #tpu.memory_space<vmem>>, vector<8x8x8xf32>
    %c0_111 = arith.constant 0 : index
    %c0_112 = arith.constant 0 : index
    %c48_113 = arith.constant 48 : index
    %78 = vector.load %arg7[%c0_111, %c0_112, %c48_113] : memref<8x8x72xf32, #tpu.memory_space<vmem>>, vector<8x8x8xf32>
    tpu.vector_store %arg7[%c0_111, %c0_112, %c48_113], %77 {strides = array<i32>} : memref<8x8x72xf32, #tpu.memory_space<vmem>>, vector<8x8x8xf32>,
    %c2_114 = arith.constant 2 : index
    %c1_115 = arith.constant 1 : index
    %c0_116 = arith.constant 0 : index
    %79 = vector.load %arg6[%c2_114, %c1_115, %c0_116] : memref<10x10x8xf32, #tpu.memory_space<vmem>>, vector<8x8x8xf32>
    %c0_117 = arith.constant 0 : index
    %c0_118 = arith.constant 0 : index
    %c56_119 = arith.constant 56 : index
    %80 = vector.load %arg7[%c0_117, %c0_118, %c56_119] : memref<8x8x72xf32, #tpu.memory_space<vmem>>, vector<8x8x8xf32>
    tpu.vector_store %arg7[%c0_117, %c0_118, %c56_119], %79 {strides = array<i32>} : memref<8x8x72xf32, #tpu.memory_space<vmem>>, vector<8x8x8xf32>,
    %c2_120 = arith.constant 2 : index
    %c2_121 = arith.constant 2 : index
    %c0_122 = arith.constant 0 : index
    %81 = vector.load %arg6[%c2_120, %c2_121, %c0_122] : memref<10x10x8xf32, #tpu.memory_space<vmem>>, vector<8x8x8xf32>
    %c0_123 = arith.constant 0 : index
    %c0_124 = arith.constant 0 : index
    %c64_125 = arith.constant 64 : index
    %82 = vector.load %arg7[%c0_123, %c0_124, %c64_125] : memref<8x8x72xf32, #tpu.memory_space<vmem>>, vector<8x8x8xf32>
    tpu.vector_store %arg7[%c0_123, %c0_124, %c64_125], %81 {strides = array<i32>} : memref<8x8x72xf32, #tpu.memory_space<vmem>>, vector<8x8x8xf32>,
    %c0_126 = arith.constant 0 : index
    %c0_127 = arith.constant 0 : index
    %c0_128 = arith.constant 0 : index
    %83 = vector.load %arg7[%c0_126, %c0_127, %c0_128] : memref<8x8x72xf32, #tpu.memory_space<vmem>>, vector<8x8x72xf32>
    %84 = vector.shape_cast %83 : vector<8x8x72xf32> to vector<64x72xf32>
    %85 = arith.truncf %84 : vector<64x72xf32> to vector<64x72xbf16>
    %cst_129 = arith.constant dense<0.000000e+00> : vector<64x8xf32>
    %86 = tpu.matmul %85, %63, %cst_129 {dimension_numbers = #tpu.dot_dimension_numbers<[1], [0], [0], [1], [0, 0, 1, 1], [], []>} : vector<64x72xbf16>, vector<72x8xbf16>, vector<64x8xf32> -> vector<64x8xf32>
    %87 = vector.shape_cast %86 : vector<64x8xf32> to vector<8x8x8xf32>
    %88 = vector.broadcast %12 : vector<1x1x8xf32> to vector<8x8x8xf32>
    %89 = arith.addf %87, %88 : vector<8x8x8xf32>
    %cst_130 = arith.constant 0.000000e+00 : f32
    %90 = vector.broadcast %cst_130 : f32 to vector<8x8x8xf32>
    %91 = arith.maximumf %89, %90 : vector<8x8x8xf32>
    %c2_131 = arith.constant 2 : index
    %c0_132 = arith.constant 0 : index
    %c0_133 = arith.constant 0 : index
    %92 = vector.load %arg3[%c2_131, %c0_132, %c0_133] : memref<3x72x8xbf16, #tpu.memory_space<vmem>>, vector<1x72x8xbf16>
    %93 = vector.shape_cast %92 : vector<1x72x8xbf16> to vector<72x8xbf16>
    %c1_134 = arith.constant 1 : index
    %c1_135 = arith.constant 1 : index
    %c0_136 = arith.constant 0 : index
    %94 = vector.load %arg6[%c1_134, %c1_135, %c0_136] : memref<10x10x8xf32, #tpu.memory_space<vmem>>, vector<8x8x8xf32>
    tpu.vector_store %arg6[%c1_134, %c1_135, %c0_136], %91 {strides = array<i32>} : memref<10x10x8xf32, #tpu.memory_space<vmem>>, vector<8x8x8xf32>,
    %c0_137 = arith.constant 0 : index
    %c0_138 = arith.constant 0 : index
    %c0_139 = arith.constant 0 : index
    %95 = vector.load %arg6[%c0_137, %c0_138, %c0_139] : memref<10x10x8xf32, #tpu.memory_space<vmem>>, vector<8x8x8xf32>
    %c0_140 = arith.constant 0 : index
    %c0_141 = arith.constant 0 : index
    %c0_142 = arith.constant 0 : index
    %96 = vector.load %arg7[%c0_140, %c0_141, %c0_142] : memref<8x8x72xf32, #tpu.memory_space<vmem>>, vector<8x8x8xf32>
    tpu.vector_store %arg7[%c0_140, %c0_141, %c0_142], %95 {strides = array<i32>} : memref<8x8x72xf32, #tpu.memory_space<vmem>>, vector<8x8x8xf32>,
    %c0_143 = arith.constant 0 : index
    %c1_144 = arith.constant 1 : index
    %c0_145 = arith.constant 0 : index
    %97 = vector.load %arg6[%c0_143, %c1_144, %c0_145] : memref<10x10x8xf32, #tpu.memory_space<vmem>>, vector<8x8x8xf32>
    %c0_146 = arith.constant 0 : index
    %c0_147 = arith.constant 0 : index
    %c8_148 = arith.constant 8 : index
    %98 = vector.load %arg7[%c0_146, %c0_147, %c8_148] : memref<8x8x72xf32, #tpu.memory_space<vmem>>, vector<8x8x8xf32>
    tpu.vector_store %arg7[%c0_146, %c0_147, %c8_148], %97 {strides = array<i32>} : memref<8x8x72xf32, #tpu.memory_space<vmem>>, vector<8x8x8xf32>,
    %c0_149 = arith.constant 0 : index
    %c2_150 = arith.constant 2 : index
    %c0_151 = arith.constant 0 : index
    %99 = vector.load %arg6[%c0_149, %c2_150, %c0_151] : memref<10x10x8xf32, #tpu.memory_space<vmem>>, vector<8x8x8xf32>
    %c0_152 = arith.constant 0 : index
    %c0_153 = arith.constant 0 : index
    %c16_154 = arith.constant 16 : index
    %100 = vector.load %arg7[%c0_152, %c0_153, %c16_154] : memref<8x8x72xf32, #tpu.memory_space<vmem>>, vector<8x8x8xf32>
    tpu.vector_store %arg7[%c0_152, %c0_153, %c16_154], %99 {strides = array<i32>} : memref<8x8x72xf32, #tpu.memory_space<vmem>>, vector<8x8x8xf32>,
    %c1_155 = arith.constant 1 : index
    %c0_156 = arith.constant 0 : index
    %c0_157 = arith.constant 0 : index
    %101 = vector.load %arg6[%c1_155, %c0_156, %c0_157] : memref<10x10x8xf32, #tpu.memory_space<vmem>>, vector<8x8x8xf32>
    %c0_158 = arith.constant 0 : index
    %c0_159 = arith.constant 0 : index
    %c24_160 = arith.constant 24 : index
    %102 = vector.load %arg7[%c0_158, %c0_159, %c24_160] : memref<8x8x72xf32, #tpu.memory_space<vmem>>, vector<8x8x8xf32>
    tpu.vector_store %arg7[%c0_158, %c0_159, %c24_160], %101 {strides = array<i32>} : memref<8x8x72xf32, #tpu.memory_space<vmem>>, vector<8x8x8xf32>,
    %c1_161 = arith.constant 1 : index
    %c1_162 = arith.constant 1 : index
    %c0_163 = arith.constant 0 : index
    %103 = vector.load %arg6[%c1_161, %c1_162, %c0_163] : memref<10x10x8xf32, #tpu.memory_space<vmem>>, vector<8x8x8xf32>
    %c0_164 = arith.constant 0 : index
    %c0_165 = arith.constant 0 : index
    %c32_166 = arith.constant 32 : index
    %104 = vector.load %arg7[%c0_164, %c0_165, %c32_166] : memref<8x8x72xf32, #tpu.memory_space<vmem>>, vector<8x8x8xf32>
    tpu.vector_store %arg7[%c0_164, %c0_165, %c32_166], %103 {strides = array<i32>} : memref<8x8x72xf32, #tpu.memory_space<vmem>>, vector<8x8x8xf32>,
    %c1_167 = arith.constant 1 : index
    %c2_168 = arith.constant 2 : index
    %c0_169 = arith.constant 0 : index
    %105 = vector.load %arg6[%c1_167, %c2_168, %c0_169] : memref<10x10x8xf32, #tpu.memory_space<vmem>>, vector<8x8x8xf32>
    %c0_170 = arith.constant 0 : index
    %c0_171 = arith.constant 0 : index
    %c40_172 = arith.constant 40 : index
    %106 = vector.load %arg7[%c0_170, %c0_171, %c40_172] : memref<8x8x72xf32, #tpu.memory_space<vmem>>, vector<8x8x8xf32>
    tpu.vector_store %arg7[%c0_170, %c0_171, %c40_172], %105 {strides = array<i32>} : memref<8x8x72xf32, #tpu.memory_space<vmem>>, vector<8x8x8xf32>,
    %c2_173 = arith.constant 2 : index
    %c0_174 = arith.constant 0 : index
    %c0_175 = arith.constant 0 : index
    %107 = vector.load %arg6[%c2_173, %c0_174, %c0_175] : memref<10x10x8xf32, #tpu.memory_space<vmem>>, vector<8x8x8xf32>
    %c0_176 = arith.constant 0 : index
    %c0_177 = arith.constant 0 : index
    %c48_178 = arith.constant 48 : index
    %108 = vector.load %arg7[%c0_176, %c0_177, %c48_178] : memref<8x8x72xf32, #tpu.memory_space<vmem>>, vector<8x8x8xf32>
    tpu.vector_store %arg7[%c0_176, %c0_177, %c48_178], %107 {strides = array<i32>} : memref<8x8x72xf32, #tpu.memory_space<vmem>>, vector<8x8x8xf32>,
    %c2_179 = arith.constant 2 : index
    %c1_180 = arith.constant 1 : index
    %c0_181 = arith.constant 0 : index
    %109 = vector.load %arg6[%c2_179, %c1_180, %c0_181] : memref<10x10x8xf32, #tpu.memory_space<vmem>>, vector<8x8x8xf32>
    %c0_182 = arith.constant 0 : index
    %c0_183 = arith.constant 0 : index
    %c56_184 = arith.constant 56 : index
    %110 = vector.load %arg7[%c0_182, %c0_183, %c56_184] : memref<8x8x72xf32, #tpu.memory_space<vmem>>, vector<8x8x8xf32>
    tpu.vector_store %arg7[%c0_182, %c0_183, %c56_184], %109 {strides = array<i32>} : memref<8x8x72xf32, #tpu.memory_space<vmem>>, vector<8x8x8xf32>,
    %c2_185 = arith.constant 2 : index
    %c2_186 = arith.constant 2 : index
    %c0_187 = arith.constant 0 : index
    %111 = vector.load %arg6[%c2_185, %c2_186, %c0_187] : memref<10x10x8xf32, #tpu.memory_space<vmem>>, vector<8x8x8xf32>
    %c0_188 = arith.constant 0 : index
    %c0_189 = arith.constant 0 : index
    %c64_190 = arith.constant 64 : index
    %112 = vector.load %arg7[%c0_188, %c0_189, %c64_190] : memref<8x8x72xf32, #tpu.memory_space<vmem>>, vector<8x8x8xf32>
    tpu.vector_store %arg7[%c0_188, %c0_189, %c64_190], %111 {strides = array<i32>} : memref<8x8x72xf32, #tpu.memory_space<vmem>>, vector<8x8x8xf32>,
    %c0_191 = arith.constant 0 : index
    %c0_192 = arith.constant 0 : index
    %c0_193 = arith.constant 0 : index
    %113 = vector.load %arg7[%c0_191, %c0_192, %c0_193] : memref<8x8x72xf32, #tpu.memory_space<vmem>>, vector<8x8x72xf32>
    %114 = vector.shape_cast %113 : vector<8x8x72xf32> to vector<64x72xf32>
    %115 = arith.truncf %114 : vector<64x72xf32> to vector<64x72xbf16>
    %cst_194 = arith.constant dense<0.000000e+00> : vector<64x8xf32>
    %116 = tpu.matmul %115, %93, %cst_194 {dimension_numbers = #tpu.dot_dimension_numbers<[1], [0], [0], [1], [0, 0, 1, 1], [], []>} : vector<64x72xbf16>, vector<72x8xbf16>, vector<64x8xf32> -> vector<64x8xf32>
    %117 = vector.shape_cast %116 : vector<64x8xf32> to vector<8x8x8xf32>
    %118 = vector.broadcast %15 : vector<1x1x8xf32> to vector<8x8x8xf32>
    %119 = arith.addf %117, %118 : vector<8x8x8xf32>
    %120 = arith.addf %119, %61 : vector<8x8x8xf32>
    %cst_195 = arith.constant 0.000000e+00 : f32
    %121 = vector.broadcast %cst_195 : f32 to vector<8x8x8xf32>
    %122 = arith.maximumf %120, %121 : vector<8x8x8xf32>
    %c0_196 = arith.constant 0 : index
    %c0_197 = arith.constant 0 : index
    %c0_198 = arith.constant 0 : index
    %c0_199 = arith.constant 0 : index
    %123 = vector.load %arg5[%c0_196, %c0_197, %c0_198, %c0_199] : memref<1x8x8x8xf32, #tpu.memory_space<vmem>>, vector<1x8x8x8xf32>
    %124 = vector.shape_cast %123 : vector<1x8x8x8xf32> to vector<8x8x8xf32>
    %125 = vector.shape_cast %122 : vector<8x8x8xf32> to vector<1x8x8x8xf32>
    tpu.vector_store %arg5[%c0_196, %c0_197, %c0_198, %c0_199], %125 {strides = array<i32>} : memref<1x8x8x8xf32, #tpu.memory_space<vmem>>, vector<1x8x8x8xf32>,
    return
  }
  func.func @transform_0(%arg0: i32) -> (i32, i32, i32) {
    %c0_i32 = arith.constant 0 : i32
    %c0_i32_0 = arith.constant 0 : i32
    %c0_i32_1 = arith.constant 0 : i32
    return %arg0, %c0_i32, %c0_i32_0 : i32, i32, i32
  }
  func.func @transform_1(%arg0: i32) -> (i32, i32) {
    %c0_i32 = arith.constant 0 : i32
    %c0_i32_0 = arith.constant 0 : i32
    %c0_i32_1 = arith.constant 0 : i32
    return %c0_i32, %c0_i32_0 : i32, i32
  }
  func.func @transform_2(%arg0: i32) -> (i32, i32, i32) {
    %c0_i32 = arith.constant 0 : i32
    %c0_i32_0 = arith.constant 0 : i32
    %c0_i32_1 = arith.constant 0 : i32
    %c0_i32_2 = arith.constant 0 : i32
    return %c0_i32, %c0_i32_0, %c0_i32_1 : i32, i32, i32
  }
  func.func @transform_3(%arg0: i32) -> (i32, i32) {
    %c0_i32 = arith.constant 0 : i32
    %c0_i32_0 = arith.constant 0 : i32
    %c0_i32_1 = arith.constant 0 : i32
    return %c0_i32, %c0_i32_0 : i32, i32
  }
  func.func @transform_4(%arg0: i32) -> (i32, i32, i32, i32) {
    %c0_i32 = arith.constant 0 : i32
    %c0_i32_0 = arith.constant 0 : i32
    %c0_i32_1 = arith.constant 0 : i32
    %c0_i32_2 = arith.constant 0 : i32
    return %arg0, %c0_i32, %c0_i32_0, %c0_i32_1 : i32, i32, i32, i32
  }
}

</mosaic_0001>

<llo_original>
// kernel: encoder_forward.1
$region0: #{encoder_forward.1}
  #allocation0 [shape = 'u32[]', space=smem, size = 0x4, offset = 0x4, fixed_abs, tag = 'smem constant byte address 0x4 - core index']
  #allocation1 [shape = 'u32[144,128]{1,0:T(1,128)}', space=vmem, size = 0x12000, scoped, tag = 'internal scratch']
  #allocation2 [shape = 'f32[10,10,8]{2,1,0:T(8,128)}', space=vmem, size = 0x14000, scoped, tag = 'scratch operand']
  #allocation3 [shape = 'f32[8,8,72]{2,1,0:T(8,128)}', space=vmem, size = 0x8000, scoped, tag = 'scratch operand']
  %s0 = inlined_call_operand.vmem [shape: bf16[2,64,36], index: 0, kind: input, shape index: {}]
  %s1 = inlined_call_operand.vmem [shape: bf16[36,16], index: 1, kind: input, shape index: {}]
  %s2 = inlined_call_operand.vmem [shape: bf16[3,72,8], index: 2, kind: input, shape index: {}]
  %s3 = inlined_call_operand.vmem [shape: f32[5,8], index: 3, kind: input, shape index: {}]
  %s4 = inlined_call_operand.hbm [shape: f32[2,8,8,8], index: 4, kind: output, shape index: {}]
  %s5 = sld [smem:[#allocation0]]
  $region49: #{encoder_forward.1} parent=0
    _
  %s7 = ssub.s32 1, %s5
  %s8 = scalar_select 0, %s7, %s5
  $region1: #{encoder_forward.1} parent=0
    #allocation4 [shape = 'u8[65536]{0}', space=vmem, size = 0x10000, scoped, tag = 'output window, operand 0']
    #allocation5 [shape = 's32[2]{0}', space=sflag, size = 0x8, scoped, tag = 'scoped memory for encoder_forward.1']
    %9 = vsyncpa [#allocation5], 0
    %s10 = scalar_lea.sflag [#allocation5], 1
    %11 = vsyncpa %s10, 0
    loop: start=0, step=1, limit=4
    $region2: #{encoder_forward.1} parent=1 // loop_pre_header
      _
    $region3: #{encoder_forward.1} parent=1 // loop_header
      %s13 = sphi 0, %s17
      %p14 = scmp.ge.s32.totalorder %s13, 4
      %s23 = sphi 0, %s25
      %s26 = sphi 0, %s23
      %s27 = sphi 0, %s26
      %s43 = sphi 0, %s27
      %s47 = sphi 0, %s47
      %s49 = sphi 0, %s47
      %s50 = sphi 0, %s49
      %s64 = sphi 0, %s50
      %s68 = sphi 0, %s68
      %s70 = sphi 0, %s68
      %s71 = sphi 0, %s70
      %s85 = sphi 0, %s71
      %s89 = sphi 0, %s89
      %s91 = sphi 0, %s89
      %s92 = sphi 0, %s91
      %s106 = sphi 0, %s92
      %s112 = sphi 0, %s114
      %s115 = sphi 0, %s112
      %s116 = sphi 0, %s115
      %s132 = sphi 0, %s116
    $region4: #{encoder_forward.1} parent=1 // loop_header_branch
      %16 = sbr.rel (%p14) target = $region8
    $region5: #{encoder_forward.1} parent=1 // loop_body
      %s18 = ssub.s32 %s13, 1
      %s19 = ssub.s32 %s13, 2
      %s20 = sadd.s32 %s13, 1
      %s21 = ssub.s32 %s13, %s20
      %p22 = scmp.eq.s32.totalorder %s21, 0
      %s24 = sadd.s32 %s23, 1
      %s25 = scalar_select %p22, %s23, %s24
      %p28 = pneg %p22
      %p29 = scmp.eq.s32.totalorder %s13, 1
      %p30 = por %p28, %p29
      %p31 = scmp.ne.s32.totalorder %s23, %s26
      %p32 = scmp.eq.s32.totalorder %s13, 0
      %p33 = por %p31, %p32
      %p34 = scmp.ne.s32.totalorder %s23, %s26
      %p35 = scmp.eq.s32.totalorder %s18, 1
      %p36 = por %p34, %p35
      %p37 = scmp.ne.s32.totalorder %s26, %s27
      %p38 = scmp.eq.s32.totalorder %s18, 0
      %p39 = por %p37, %p38
      %p40 = scmp.ne.s32.totalorder %s26, %s27
      %p41 = scmp.eq.s32.totalorder %s19, 1
      %p42 = por %p40, %p41
      %p44 = scmp.ne.s32.totalorder %s27, %s43
      %p45 = scmp.eq.s32.totalorder %s19, 0
      %p46 = por %p44, %p45
      %s48 = sadd.s32 %s47, 1
      %p51 = scmp.eq.s32.totalorder %s13, 1
      %p52 = scmp.ne.s32.totalorder %s47, %s49
      %p53 = scmp.eq.s32.totalorder %s13, 0
      %p54 = por %p52, %p53
      %p55 = scmp.ne.s32.totalorder %s47, %s49
      %p56 = scmp.eq.s32.totalorder %s18, 1
      %p57 = por %p55, %p56
      %p58 = scmp.ne.s32.totalorder %s49, %s50
      %p59 = scmp.eq.s32.totalorder %s18, 0
      %p60 = por %p58, %p59
      %p61 = scmp.ne.s32.totalorder %s49, %s50
      %p62 = scmp.eq.s32.totalorder %s19, 1
      %p63 = por %p61, %p62
      %p65 = scmp.ne.s32.totalorder %s50, %s64
      %p66 = scmp.eq.s32.totalorder %s19, 0
      %p67 = por %p65, %p66
      %s69 = sadd.s32 %s68, 1
      %p72 = scmp.eq.s32.totalorder %s13, 1
      %p73 = scmp.ne.s32.totalorder %s68, %s70
      %p74 = scmp.eq.s32.totalorder %s13, 0
      %p75 = por %p73, %p74
      %p76 = scmp.ne.s32.totalorder %s68, %s70
      %p77 = scmp.eq.s32.totalorder %s18, 1
      %p78 = por %p76, %p77
      %p79 = scmp.ne.s32.totalorder %s70, %s71
      %p80 = scmp.eq.s32.totalorder %s18, 0
      %p81 = por %p79, %p80
      %p82 = scmp.ne.s32.totalorder %s70, %s71
      %p83 = scmp.eq.s32.totalorder %s19, 1
      %p84 = por %p82, %p83
      %p86 = scmp.ne.s32.totalorder %s71, %s85
      %p87 = scmp.eq.s32.totalorder %s19, 0
      %p88 = por %p86, %p87
      %s90 = sadd.s32 %s89, 1
      %p93 = scmp.eq.s32.totalorder %s13, 1
      %p94 = scmp.ne.s32.totalorder %s89, %s91
      %p95 = scmp.eq.s32.totalorder %s13, 0
      %p96 = por %p94, %p95
      %p97 = scmp.ne.s32.totalorder %s89, %s91
      %p98 = scmp.eq.s32.totalorder %s18, 1
      %p99 = por %p97, %p98
      %p100 = scmp.ne.s32.totalorder %s91, %s92
      %p101 = scmp.eq.s32.totalorder %s18, 0
      %p102 = por %p100, %p101
      %p103 = scmp.ne.s32.totalorder %s91, %s92
      %p104 = scmp.eq.s32.totalorder %s19, 1
      %p105 = por %p103, %p104
      %p107 = scmp.ne.s32.totalorder %s92, %s106
      %p108 = scmp.eq.s32.totalorder %s19, 0
      %p109 = por %p107, %p108
      %s110 = ssub.s32 %s13, %s20
      %p111 = scmp.eq.s32.totalorder %s110, 0
      %s113 = sadd.s32 %s112, 1
      %s114 = scalar_select %p111, %s112, %s113
      %p117 = pneg %p111
      %p118 = scmp.eq.s32.totalorder %s13, 1
      %p119 = por %p117, %p118
      %p120 = scmp.ne.s32.totalorder %s112, %s115
      %p121 = scmp.eq.s32.totalorder %s13, 0
      %p122 = por %p120, %p121
      %p123 = scmp.ne.s32.totalorder %s112, %s115
      %p124 = scmp.eq.s32.totalorder %s18, 1
      %p125 = por %p123, %p124
      %p126 = scmp.ne.s32.totalorder %s115, %s116
      %p127 = scmp.eq.s32.totalorder %s18, 0
      %p128 = por %p126, %p127
      %p129 = scmp.ne.s32.totalorder %s115, %s116
      %p130 = scmp.eq.s32.totalorder %s19, 1
      %p131 = por %p129, %p130
      %p133 = scmp.ne.s32.totalorder %s116, %s132
      %p134 = scmp.eq.s32.totalorder %s19, 0
      %p135 = por %p133, %p134
      %p136 = scmp.le.s32.totalorder 1, %s13
      %p137 = scmp.lt.s32.totalorder %s13, 3
      %p138 = pnand %p136, %p137
      %p139 = pneg %p138
      // Predicated region
      $region9: #{encoder_forward.1} parent=5 // pred_check
        _
      $region10: #{encoder_forward.1} parent=5 // pred_check_branch
        %141 = sbr.rel (%p138) target = $region12
      $region11: #{encoder_forward.1} parent=5 // pred_region
        %s142 = ssub.s32 %s13, 1
        // Predicated region
        $region13: #{encoder_forward.1} parent=11 // pred_check
          %p143 = pneg %p60
        $region14: #{encoder_forward.1} parent=11 // pred_check_branch
          %145 = sbr.rel (%p143) target = $region16
        $region15: #{encoder_forward.1} parent=11 // pred_region
          _
        $region16: #{encoder_forward.1} parent=11 // pred_fallthru
          _
        // Predicated region
        $region17: #{encoder_forward.1} parent=11 // pred_check
          %p146 = pneg %p81
        $region18: #{encoder_forward.1} parent=11 // pred_check_branch
          %148 = sbr.rel (%p146) target = $region20
        $region19: #{encoder_forward.1} parent=11 // pred_region
          _
        $region20: #{encoder_forward.1} parent=11 // pred_fallthru
          _
        // Predicated region
        $region21: #{encoder_forward.1} parent=11 // pred_check
          %p149 = pneg %p102
        $region22: #{encoder_forward.1} parent=11 // pred_check_branch
          %151 = sbr.rel (%p149) target = $region24
        $region23: #{encoder_forward.1} parent=11 // pred_region
          _
        $region24: #{encoder_forward.1} parent=11 // pred_fallthru
          _
      $region12: #{encoder_forward.1} parent=5 // pred_fallthru
        _
      %p152 = scmp.lt.s32.totalorder %s13, 2
      // Predicated region
      $region25: #{encoder_forward.1} parent=5 // pred_check
        %p153 = pneg %p152
      $region26: #{encoder_forward.1} parent=5 // pred_check_branch
        %155 = sbr.rel (%p153) target = $region28
      $region27: #{encoder_forward.1} parent=5 // pred_region
        // Predicated region
        $region29: #{encoder_forward.1} parent=27 // pred_check
          %p156 = pneg %p33
        $region30: #{encoder_forward.1} parent=27 // pred_check_branch
          %158 = sbr.rel (%p156) target = $region32
        $region31: #{encoder_forward.1} parent=27 // pred_region
          %p159 = scmp.lt.s32.totalorder %s13, 1
          %s160 = scalar_select %p159, %s13, 1
          %s161 = smul.addr %s160, 8
          %s162 = smul.addr %s161, 4
          %s163 = scalar_lea.vmem %s0, %s162
        $region32: #{encoder_forward.1} parent=27 // pred_fallthru
          _
      $region28: #{encoder_forward.1} parent=5 // pred_fallthru
        _
      %p164 = scmp.le.s32.totalorder 1, %s13
      %p165 = scmp.lt.s32.totalorder %s13, 3
      %p166 = pnand %p164, %p165
      %p167 = pneg %p166
      // Predicated region
      $region33: #{encoder_forward.1} parent=5 // pred_check
        _
      $region34: #{encoder_forward.1} parent=5 // pred_check_branch
        %169 = sbr.rel (%p166) target = $region36
      $region35: #{encoder_forward.1} parent=5 // pred_region
        %s170 = ssub.s32 %s13, 1
        %p171 = scmp.lt.s32.totalorder %s18, 1
        %s172 = scalar_select %p171, %s18, 1
        %s173 = smul.addr %s172, 8
        %s174 = smul.addr %s173, 4
        %s175 = scalar_lea.vmem %s0, %s174
        %p176 = pneg %p39
        %p177 = pneg %p36
        %p178 = pneg %p60
        %p179 = pneg %p57
        %p180 = pneg %p81
        %p181 = pneg %p78
        %p182 = pneg %p102
        %p183 = pneg %p99
        %p184 = pneg %p128
        %p185 = pneg %p125
        %s186 = sand.u32 %s115, 1
        %s187 = scalar_lea.sflag [#allocation5], %s186
        %s188 = sand.u32 %s115, 1
        %s189 = smul.addr %s188, 64
        %s190 = scalar_lea.vmem [#allocation4], %s189
        %p191 = scmp.lt.s32.totalorder %s18, 1
        %s192 = scalar_select %p191, %s18, 1
        %s193 = smul.addr %s192, 8
        %s194 = smul.addr %s193, 4
        %s195 = scalar_lea.vmem %s0, %s194
        %v197 = vld [vmem:[%s3] sm:$0x1f]
        %vm198 = vcmask 64512
        %199 = vst.msk [vmem:[#allocation2] sm:$0xff] %vm198, 0.0
        %vm200 = vcmask 58368
        %201 = vst.msk [vmem:[#allocation2 + $0x8] sm:$0x3] %vm200, 0.0
        %202 = vst.msk [vmem:[#allocation2 + $0x10] sm:$0xff] %vm198, 0.0
        %203 = vst.msk [vmem:[#allocation2 + $0x18] sm:$0x3] %vm200, 0.0
        %204 = vst.msk [vmem:[#allocation2 + $0x20] sm:$0xff] %vm198, 0.0
        %205 = vst.msk [vmem:[#allocation2 + $0x28] sm:$0x3] %vm200, 0.0
        %206 = vst.msk [vmem:[#allocation2 + $0x30] sm:$0xff] %vm198, 0.0
        %207 = vst.msk [vmem:[#allocation2 + $0x38] sm:$0x3] %vm200, 0.0
        %208 = vst.msk [vmem:[#allocation2 + $0x40] sm:$0xff] %vm198, 0.0
        %209 = vst.msk [vmem:[#allocation2 + $0x48] sm:$0x3] %vm200, 0.0
        %210 = vst.msk [vmem:[#allocation2 + $0x50] sm:$0xff] %vm198, 0.0
        %211 = vst.msk [vmem:[#allocation2 + $0x58] sm:$0x3] %vm200, 0.0
        %212 = vst.msk [vmem:[#allocation2 + $0x60] sm:$0xff] %vm198, 0.0
        %213 = vst.msk [vmem:[#allocation2 + $0x68] sm:$0x3] %vm200, 0.0
        %214 = vst.msk [vmem:[#allocation2 + $0x70] sm:$0xff] %vm198, 0.0
        %215 = vst.msk [vmem:[#allocation2 + $0x78] sm:$0x3] %vm200, 0.0
        %216 = vst.msk [vmem:[#allocation2 + $0x80] sm:$0xff] %vm198, 0.0
        %217 = vst.msk [vmem:[#allocation2 + $0x88] sm:$0x3] %vm200, 0.0
        %218 = vst.msk [vmem:[#allocation2 + $0x90] sm:$0xff] %vm198, 0.0
        %219 = vst.msk [vmem:[#allocation2 + $0x98] sm:$0x3] %vm200, 0.0
        %v220 = vld [vmem:[%s195] sm:$0xf]
        %v221 = vld [vmem:[%s195 + $0x4] sm:$0xf]
        %v222 = vld [vmem:[%s195 + $0x8] sm:$0xf]
        %v223 = vld [vmem:[%s195 + $0xc] sm:$0xf]
        %v224 = vld [vmem:[%s195 + $0x10] sm:$0xf]
        %v225 = vld [vmem:[%s195 + $0x14] sm:$0xf]
        %v226 = vld [vmem:[%s195 + $0x18] sm:$0xf]
        %v227 = vld [vmem:[%s195 + $0x1c] sm:$0xf]
        %v228 = vld [vmem:[%s1] sm:$0xf]
        %v229 = vld [vmem:[%s1 + $0x4] sm:$0xf]
        %v230 = vld [vmem:[%s1 + $0x8] sm:$0xf]
        %v231 = vld [vmem:[%s1 + $0xc] sm:$0xf]
        %v232 = vld [vmem:[%s1 + $0x10] sm:$0x3]
        %v241 = vunpack.c.l.b16 %v220
        %v242 = vunpack.c.l.b16 %v221
        %v243 = vunpack.c.l.b16 %v222
        %v244 = vunpack.c.l.b16 %v223
        %v245 = vunpack.c.l.b16 %v224
        %v246 = vunpack.c.l.b16 %v225
        %v247 = vunpack.c.l.b16 %v226
        %v248 = vunpack.c.l.b16 %v227
        %v249 = vpack.c.b16 %v242, %v241
        %v250 = vpack.c.b16 %v244, %v243
        %v251 = vpack.c.b16 %v246, %v245
        %v252 = vpack.c.b16 %v248, %v247
        %v258 = vunpack.c.l.b16 %v228
        %v259 = vunpack.c.l.b16 %v229
        %v260 = vunpack.c.l.b16 %v230
        %v261 = vunpack.c.l.b16 %v231
        %v262 = vunpack.c.l.b16 %v232
        %v263 = vpack.c.b16 %v259, %v258
        %v264 = vpack.c.b16 %v261, %v260
        %v265 = vpack.c.b16 %v262, %v262
        %vm268 = vcmask 293888
        %v270 = vsel %vm268, %v249, 0
        %v273 = vsel %vm268, %v250, 0
        %v276 = vsel %vm268, %v251, 0
        %v279 = vsel %vm268, %v252, 0
        %vm281 = vcmask 1041408
        %v283 = vsel %vm281, %v265, 0
        %285 = vmatprep.subr.bf16.mxu0 0
        %286 = vmatpush1.bf16.msra.mxu0 %v263
        %287 = vmatprep.subr.bf16.mxu0 0
        %288 = vmatpush1.bf16.msra.mxu0 %v264
        %289 = vmatprep.subr.bf16.mxu0 0
        %290 = vmatpush1.bf16.msra.mxu0 %v283
        %291 = vmatprep.subr.bf16.mxu0 0
        %292 = vmatpush1.bf16.msra.mxu0 0
        %293 = vmatprep.subr.bf16.mxu0 0
        %294 = vmatpush1.bf16.msra.mxu0 0
        %295 = vmatprep.subr.bf16.mxu0 0
        %296 = vmatpush1.bf16.msra.mxu0 0
        %297 = vmatprep.subr.bf16.mxu0 0
        %298 = vmatpush1.bf16.msra.mxu0 0
        %299 = vmatprep.subr.bf16.mxu0 0
        %300 = vmatpush1.bf16.msra.mxu0 0
        %301 = vmatprep.subr.bf16.mxu0 0
        %302 = vmatpush1.bf16.msra.mxu0 0
        %303 = vmatprep.subr.bf16.mxu0 0
        %304 = vmatpush1.bf16.msra.mxu0 0
        %305 = vmatprep.subr.bf16.mxu0 0
        %306 = vmatpush1.bf16.msra.mxu0 0
        %307 = vmatprep.subr.bf16.mxu0 0
        %308 = vmatpush1.bf16.msra.mxu0 0
        %309 = vmatprep.subr.bf16.mxu0 0
        %310 = vmatpush1.bf16.msra.mxu0 0
        %311 = vmatprep.subr.bf16.mxu0 0
        %312 = vmatpush1.bf16.msra.mxu0 0
        %313 = vmatprep.subr.bf16.mxu0 0
        %314 = vmatpush1.bf16.msra.mxu0 0
        %315 = vmatprep.subr.bf16.mxu0 0
        %316 = vmatpush1.bf16.msra.mxu0 0
        %317 = vmatprep.mubr.bf16.mxu0 0
        %318 = vmatmul.mubr.bf16.gmra.mrb[0].mxu0 %v270
        %v319 = vpop.f32.mrb[0].mxu0
        %v320 = vadd.f32 0.0, %v319
        %v321 = vpop.f32.mrb[0].mxu0
        %v322 = vpop.f32.mrb[0].mxu0
        %v323 = vadd.f32 0.0, %v322
        %v324 = vpop.f32.mrb[0].mxu0
        %325 = vmatprep.mubr.bf16.mxu0 0
        %326 = vmatmul.mubr.bf16.gmra.mrb[0].mxu0 %v273
        %v327 = vpop.f32.mrb[0].mxu0
        %v328 = vadd.f32 0.0, %v327
        %v329 = vpop.f32.mrb[0].mxu0
        %v330 = vpop.f32.mrb[0].mxu0
        %v331 = vadd.f32 0.0, %v330
        %v332 = vpop.f32.mrb[0].mxu0
        %333 = vmatprep.mubr.bf16.mxu0 0
        %334 = vmatmul.mubr.bf16.gmra.mrb[0].mxu0 %v276
        %v335 = vpop.f32.mrb[0].mxu0
        %v336 = vadd.f32 0.0, %v335
        %v337 = vpop.f32.mrb[0].mxu0
        %v338 = vpop.f32.mrb[0].mxu0
        %v339 = vadd.f32 0.0, %v338
        %v340 = vpop.f32.mrb[0].mxu0
        %341 = vmatprep.mubr.bf16.mxu0 0
        %342 = vmatmul.mubr.bf16.gmra.mrb[0].mxu0 %v279
        %v343 = vpop.f32.mrb[0].mxu0
        %v344 = vadd.f32 0.0, %v343
        %v345 = vpop.f32.mrb[0].mxu0
        %v346 = vpop.f32.mrb[0].mxu0
        %v347 = vadd.f32 0.0, %v346
        %v348 = vpop.f32.mrb[0].mxu0
        %349 = vdwg.mxu0
        %v350 = vlaneseq
        %v351 = vshrl.u32 %v350, 7
        %v352 = vsub.s32 0, %v351
        %v353 = vrot.slane %v197, %v352
        %v354 = vadd.f32 %v320, %v353
        %v355 = vadd.f32 %v323, %v353
        %v356 = vadd.f32 %v328, %v353
        %v357 = vadd.f32 %v331, %v353
        %v358 = vadd.f32 %v336, %v353
        %v359 = vadd.f32 %v339, %v353
        %v360 = vadd.f32 %v344, %v353
        %v361 = vadd.f32 %v347, %v353
        %v362 = vmax.f32 %v354, 0.0
        %v363 = vmax.f32 %v355, 0.0
        %v364 = vmax.f32 %v356, 0.0
        %v365 = vmax.f32 %v357, 0.0
        %v366 = vmax.f32 %v358, 0.0
        %v367 = vmax.f32 %v359, 0.0
        %v368 = vmax.f32 %v360, 0.0
        %v369 = vmax.f32 %v361, 0.0
        %v370 = vlaneseq
        %v371 = vshrl.u32 %v370, 7
        %v372 = vsub.s32 1, %v371
        %v373 = vrot.slane %v197, %v372
        %375 = vrot.lane.b32.xlu0 %v373, 8
        %v376 = vpop.permute.xlu0 %375
        %v378 = vadd.f32 %v320, %v376
        %v379 = vadd.f32 %v323, %v376
        %v380 = vadd.f32 %v328, %v376
        %v381 = vadd.f32 %v331, %v376
        %v382 = vadd.f32 %v336, %v376
        %v383 = vadd.f32 %v339, %v376
        %v384 = vadd.f32 %v344, %v376
        %v385 = vadd.f32 %v347, %v376
        %v386 = vld [vmem:[%s2] sm:$0xf]
        %v387 = vld [vmem:[%s2 + $0x4] sm:$0xf]
        %v388 = vld [vmem:[%s2 + $0x8] sm:$0xf]
        %v389 = vld [vmem:[%s2 + $0xc] sm:$0xf]
        %v390 = vld [vmem:[%s2 + $0x10] sm:$0xf]
        %v391 = vld [vmem:[%s2 + $0x14] sm:$0xf]
        %v392 = vld [vmem:[%s2 + $0x18] sm:$0xf]
        %v393 = vld [vmem:[%s2 + $0x1c] sm:$0xf]
        %v394 = vld [vmem:[%s2 + $0x20] sm:$0xf]
        %s395 = scalar_lea.vmem [#allocation2], 16
        %396 = vst.msk [vmem:[%s395 + $0x1] sm:$0xff] %vm198, %v362
        %397 = vst.msk [vmem:[%s395 + $0x11] sm:$0xff] %vm198, %v363
        %398 = vst.msk [vmem:[%s395 + $0x21] sm:$0xff] %vm198, %v364
        %399 = vst.msk [vmem:[%s395 + $0x31] sm:$0xff] %vm198, %v365
        %400 = vst.msk [vmem:[%s395 + $0x41] sm:$0xff] %vm198, %v366
        %401 = vst.msk [vmem:[%s395 + $0x51] sm:$0xff] %vm198, %v367
        %402 = vst.msk [vmem:[%s395 + $0x61] sm:$0xff] %vm198, %v368
        %403 = vst.msk [vmem:[%s395 + $0x71] sm:$0xff] %vm198, %v369
        %v404 = vld [vmem:[#allocation2] sm:$0xff]
        %v405 = vld [vmem:[#allocation2 + $0x10] sm:$0xff]
        %v406 = vld [vmem:[#allocation2 + $0x20] sm:$0xff]
        %v407 = vld [vmem:[#allocation2 + $0x30] sm:$0xff]
        %v408 = vld [vmem:[#allocation2 + $0x40] sm:$0xff]
        %v409 = vld [vmem:[#allocation2 + $0x50] sm:$0xff]
        %v410 = vld [vmem:[#allocation2 + $0x60] sm:$0xff]
        %v411 = vld [vmem:[#allocation2 + $0x70] sm:$0xff]
        %412 = vst.msk [vmem:[#allocation3] sm:$0xff] %vm198, %v404
        %413 = vst.msk [vmem:[#allocation3 + $0x8] sm:$0xff] %vm198, %v405
        %414 = vst.msk [vmem:[#allocation3 + $0x10] sm:$0xff] %vm198, %v406
        %415 = vst.msk [vmem:[#allocation3 + $0x18] sm:$0xff] %vm198, %v407
        %416 = vst.msk [vmem:[#allocation3 + $0x20] sm:$0xff] %vm198, %v408
        %417 = vst.msk [vmem:[#allocation3 + $0x28] sm:$0xff] %vm198, %v409
        %418 = vst.msk [vmem:[#allocation3 + $0x30] sm:$0xff] %vm198, %v410
        %419 = vst.msk [vmem:[#allocation3 + $0x38] sm:$0xff] %vm198, %v411
        %v420 = vld [vmem:[#allocation2 + $0x1] sm:$0xff]
        %v421 = vld [vmem:[#allocation2 + $0x11] sm:$0xff]
        %v422 = vld [vmem:[#allocation2 + $0x21] sm:$0xff]
        %v423 = vld [vmem:[#allocation2 + $0x31] sm:$0xff]
        %v424 = vld [vmem:[#allocation2 + $0x41] sm:$0xff]
        %v425 = vld [vmem:[#allocation2 + $0x51] sm:$0xff]
        %v426 = vld [vmem:[#allocation2 + $0x61] sm:$0xff]
        %v427 = vld [vmem:[#allocation2 + $0x71] sm:$0xff]
        %436 = vrot.lane.b32.xlu0 %v420, 8
        %v437 = vpop.permute.xlu0 %436
        %438 = vrot.lane.b32.xlu0 %v421, 8
        %v439 = vpop.permute.xlu0 %438
        %440 = vrot.lane.b32.xlu0 %v422, 8
        %v441 = vpop.permute.xlu0 %440
        %442 = vrot.lane.b32.xlu0 %v423, 8
        %v443 = vpop.permute.xlu0 %442
        %444 = vrot.lane.b32.xlu0 %v424, 8
        %v445 = vpop.permute.xlu0 %444
        %446 = vrot.lane.b32.xlu0 %v425, 8
        %v447 = vpop.permute.xlu0 %446
        %448 = vrot.lane.b32.xlu0 %v426, 8
        %v449 = vpop.permute.xlu0 %448
        %450 = vrot.lane.b32.xlu0 %v427, 8
        %v451 = vpop.permute.xlu0 %450
        %vm460 = vcmask 130112
        %461 = vst.msk [vmem:[#allocation3] sm:$0xff] %vm460, %v437
        %462 = vst.msk [vmem:[#allocation3 + $0x8] sm:$0xff] %vm460, %v439
        %463 = vst.msk [vmem:[#allocation3 + $0x10] sm:$0xff] %vm460, %v441
        %464 = vst.msk [vmem:[#allocation3 + $0x18] sm:$0xff] %vm460, %v443
        %465 = vst.msk [vmem:[#allocation3 + $0x20] sm:$0xff] %vm460, %v445
        %466 = vst.msk [vmem:[#allocation3 + $0x28] sm:$0xff] %vm460, %v447
        %467 = vst.msk [vmem:[#allocation3 + $0x30] sm:$0xff] %vm460, %v449
        %468 = vst.msk [vmem:[#allocation3 + $0x38] sm:$0xff] %vm460, %v451
        %v469 = vld [vmem:[#allocation2 + $0x2] sm:$0xff]
        %v470 = vld [vmem:[#allocation2 + $0x12] sm:$0xff]
        %v471 = vld [vmem:[#allocation2 + $0x22] sm:$0xff]
        %v472 = vld [vmem:[#allocation2 + $0x32] sm:$0xff]
        %v473 = vld [vmem:[#allocation2 + $0x42] sm:$0xff]
        %v474 = vld [vmem:[#allocation2 + $0x52] sm:$0xff]
        %v475 = vld [vmem:[#allocation2 + $0x62] sm:$0xff]
        %v476 = vld [vmem:[#allocation2 + $0x72] sm:$0xff]
        %485 = vrot.lane.b32.xlu0 %v469, 16
        %v486 = vpop.permute.xlu0 %485
        %487 = vrot.lane.b32.xlu0 %v470, 16
        %v488 = vpop.permute.xlu0 %487
        %489 = vrot.lane.b32.xlu0 %v471, 16
        %v490 = vpop.permute.xlu0 %489
        %491 = vrot.lane.b32.xlu0 %v472, 16
        %v492 = vpop.permute.xlu0 %491
        %493 = vrot.lane.b32.xlu0 %v473, 16
        %v494 = vpop.permute.xlu0 %493
        %495 = vrot.lane.b32.xlu0 %v474, 16
        %v496 = vpop.permute.xlu0 %495
        %497 = vrot.lane.b32.xlu0 %v475, 16
        %v498 = vpop.permute.xlu0 %497
        %499 = vrot.lane.b32.xlu0 %v476, 16
        %v500 = vpop.permute.xlu0 %499
        %vm509 = vcmask 195712
        %510 = vst.msk [vmem:[#allocation3] sm:$0xff] %vm509, %v486
        %511 = vst.msk [vmem:[#allocation3 + $0x8] sm:$0xff] %vm509, %v488
        %512 = vst.msk [vmem:[#allocation3 + $0x10] sm:$0xff] %vm509, %v490
        %513 = vst.msk [vmem:[#allocation3 + $0x18] sm:$0xff] %vm509, %v492
        %514 = vst.msk [vmem:[#allocation3 + $0x20] sm:$0xff] %vm509, %v494
        %515 = vst.msk [vmem:[#allocation3 + $0x28] sm:$0xff] %vm509, %v496
        %516 = vst.msk [vmem:[#allocation3 + $0x30] sm:$0xff] %vm509, %v498
        %517 = vst.msk [vmem:[#allocation3 + $0x38] sm:$0xff] %vm509, %v500
        %v518 = vld [vmem:[%s395] sm:$0xff]
        %v519 = vld [vmem:[%s395 + $0x10] sm:$0xff]
        %v520 = vld [vmem:[%s395 + $0x20] sm:$0xff]
        %v521 = vld [vmem:[%s395 + $0x30] sm:$0xff]
        %v522 = vld [vmem:[%s395 + $0x40] sm:$0xff]
        %v523 = vld [vmem:[%s395 + $0x50] sm:$0xff]
        %v524 = vld [vmem:[%s395 + $0x60] sm:$0xff]
        %v525 = vld [vmem:[%s395 + $0x70] sm:$0xff]
        %534 = vrot.lane.b32.xlu0 %v518, 24
        %v535 = vpop.permute.xlu0 %534
        %536 = vrot.lane.b32.xlu0 %v519, 24
        %v537 = vpop.permute.xlu0 %536
        %538 = vrot.lane.b32.xlu0 %v520, 24
        %v539 = vpop.permute.xlu0 %538
        %540 = vrot.lane.b32.xlu0 %v521, 24
        %v541 = vpop.permute.xlu0 %540
        %542 = vrot.lane.b32.xlu0 %v522, 24
        %v543 = vpop.permute.xlu0 %542
        %544 = vrot.lane.b32.xlu0 %v523, 24
        %v545 = vpop.permute.xlu0 %544
        %546 = vrot.lane.b32.xlu0 %v524, 24
        %v547 = vpop.permute.xlu0 %546
        %548 = vrot.lane.b32.xlu0 %v525, 24
        %v549 = vpop.permute.xlu0 %548
        %vm558 = vcmask 261312
        %559 = vst.msk [vmem:[#allocation3] sm:$0xff] %vm558, %v535
        %560 = vst.msk [vmem:[#allocation3 + $0x8] sm:$0xff] %vm558, %v537
        %561 = vst.msk [vmem:[#allocation3 + $0x10] sm:$0xff] %vm558, %v539
        %562 = vst.msk [vmem:[#allocation3 + $0x18] sm:$0xff] %vm558, %v541
        %563 = vst.msk [vmem:[#allocation3 + $0x20] sm:$0xff] %vm558, %v543
        %564 = vst.msk [vmem:[#allocation3 + $0x28] sm:$0xff] %vm558, %v545
        %565 = vst.msk [vmem:[#allocation3 + $0x30] sm:$0xff] %vm558, %v547
        %566 = vst.msk [vmem:[#allocation3 + $0x38] sm:$0xff] %vm558, %v549
        %v567 = vld [vmem:[%s395 + $0x1] sm:$0xff]
        %v568 = vld [vmem:[%s395 + $0x11] sm:$0xff]
        %v569 = vld [vmem:[%s395 + $0x21] sm:$0xff]
        %v570 = vld [vmem:[%s395 + $0x31] sm:$0xff]
        %v571 = vld [vmem:[%s395 + $0x41] sm:$0xff]
        %v572 = vld [vmem:[%s395 + $0x51] sm:$0xff]
        %v573 = vld [vmem:[%s395 + $0x61] sm:$0xff]
        %v574 = vld [vmem:[%s395 + $0x71] sm:$0xff]
        %583 = vrot.lane.b32.xlu0 %v567, 32
        %v584 = vpop.permute.xlu0 %583
        %585 = vrot.lane.b32.xlu0 %v568, 32
        %v586 = vpop.permute.xlu0 %585
        %587 = vrot.lane.b32.xlu0 %v569, 32
        %v588 = vpop.permute.xlu0 %587
        %589 = vrot.lane.b32.xlu0 %v570, 32
        %v590 = vpop.permute.xlu0 %589
        %591 = vrot.lane.b32.xlu0 %v571, 32
        %v592 = vpop.permute.xlu0 %591
        %593 = vrot.lane.b32.xlu0 %v572, 32
        %v594 = vpop.permute.xlu0 %593
        %595 = vrot.lane.b32.xlu0 %v573, 32
        %v596 = vpop.permute.xlu0 %595
        %597 = vrot.lane.b32.xlu0 %v574, 32
        %v598 = vpop.permute.xlu0 %597
        %vm607 = vcmask 326912
        %608 = vst.msk [vmem:[#allocation3] sm:$0xff] %vm607, %v584
        %609 = vst.msk [vmem:[#allocation3 + $0x8] sm:$0xff] %vm607, %v586
        %610 = vst.msk [vmem:[#allocation3 + $0x10] sm:$0xff] %vm607, %v588
        %611 = vst.msk [vmem:[#allocation3 + $0x18] sm:$0xff] %vm607, %v590
        %612 = vst.msk [vmem:[#allocation3 + $0x20] sm:$0xff] %vm607, %v592
        %613 = vst.msk [vmem:[#allocation3 + $0x28] sm:$0xff] %vm607, %v594
        %614 = vst.msk [vmem:[#allocation3 + $0x30] sm:$0xff] %vm607, %v596
        %615 = vst.msk [vmem:[#allocation3 + $0x38] sm:$0xff] %vm607, %v598
        %v616 = vld [vmem:[%s395 + $0x2] sm:$0xff]
        %v617 = vld [vmem:[%s395 + $0x12] sm:$0xff]
        %v618 = vld [vmem:[%s395 + $0x22] sm:$0xff]
        %v619 = vld [vmem:[%s395 + $0x32] sm:$0xff]
        %v620 = vld [vmem:[%s395 + $0x42] sm:$0xff]
        %v621 = vld [vmem:[%s395 + $0x52] sm:$0xff]
        %v622 = vld [vmem:[%s395 + $0x62] sm:$0xff]
        %v623 = vld [vmem:[%s395 + $0x72] sm:$0xff]
        %632 = vrot.lane.b32.xlu0 %v616, 40
        %v633 = vpop.permute.xlu0 %632
        %634 = vrot.lane.b32.xlu0 %v617, 40
        %v635 = vpop.permute.xlu0 %634
        %636 = vrot.lane.b32.xlu0 %v618, 40
        %v637 = vpop.permute.xlu0 %636
        %638 = vrot.lane.b32.xlu0 %v619, 40
        %v639 = vpop.permute.xlu0 %638
        %640 = vrot.lane.b32.xlu0 %v620, 40
        %v641 = vpop.permute.xlu0 %640
        %642 = vrot.lane.b32.xlu0 %v621, 40
        %v643 = vpop.permute.xlu0 %642
        %644 = vrot.lane.b32.xlu0 %v622, 40
        %v645 = vpop.permute.xlu0 %644
        %646 = vrot.lane.b32.xlu0 %v623, 40
        %v647 = vpop.permute.xlu0 %646
        %vm656 = vcmask 392512
        %657 = vst.msk [vmem:[#allocation3] sm:$0xff] %vm656, %v633
        %658 = vst.msk [vmem:[#allocation3 + $0x8] sm:$0xff] %vm656, %v635
        %659 = vst.msk [vmem:[#allocation3 + $0x10] sm:$0xff] %vm656, %v637
        %660 = vst.msk [vmem:[#allocation3 + $0x18] sm:$0xff] %vm656, %v639
        %661 = vst.msk [vmem:[#allocation3 + $0x20] sm:$0xff] %vm656, %v641
        %662 = vst.msk [vmem:[#allocation3 + $0x28] sm:$0xff] %vm656, %v643
        %663 = vst.msk [vmem:[#allocation3 + $0x30] sm:$0xff] %vm656, %v645
        %664 = vst.msk [vmem:[#allocation3 + $0x38] sm:$0xff] %vm656, %v647
        %s665 = scalar_lea.vmem [#allocation2], 32
        %v666 = vld [vmem:[%s665] sm:$0xff]
        %v667 = vld [vmem:[%s665 + $0x10] sm:$0xff]
        %v668 = vld [vmem:[%s665 + $0x20] sm:$0xff]
        %v669 = vld [vmem:[%s665 + $0x30] sm:$0xff]
        %v670 = vld [vmem:[%s665 + $0x40] sm:$0xff]
        %v671 = vld [vmem:[%s665 + $0x50] sm:$0xff]
        %v672 = vld [vmem:[%s665 + $0x60] sm:$0xff]
        %v673 = vld [vmem:[%s665 + $0x70] sm:$0xff]
        %682 = vrot.lane.b32.xlu0 %v666, 48
        %v683 = vpop.permute.xlu0 %682
        %684 = vrot.lane.b32.xlu0 %v667, 48
        %v685 = vpop.permute.xlu0 %684
        %686 = vrot.lane.b32.xlu0 %v668, 48
        %v687 = vpop.permute.xlu0 %686
        %688 = vrot.lane.b32.xlu0 %v669, 48
        %v689 = vpop.permute.xlu0 %688
        %690 = vrot.lane.b32.xlu0 %v670, 48
        %v691 = vpop.permute.xlu0 %690
        %692 = vrot.lane.b32.xlu0 %v671, 48
        %v693 = vpop.permute.xlu0 %692
        %694 = vrot.lane.b32.xlu0 %v672, 48
        %v695 = vpop.permute.xlu0 %694
        %696 = vrot.lane.b32.xlu0 %v673, 48
        %v697 = vpop.permute.xlu0 %696
        %vm706 = vcmask 458112
        %707 = vst.msk [vmem:[#allocation3] sm:$0xff] %vm706, %v683
        %708 = vst.msk [vmem:[#allocation3 + $0x8] sm:$0xff] %vm706, %v685
        %709 = vst.msk [vmem:[#allocation3 + $0x10] sm:$0xff] %vm706, %v687
        %710 = vst.msk [vmem:[#allocation3 + $0x18] sm:$0xff] %vm706, %v689
        %711 = vst.msk [vmem:[#allocation3 + $0x20] sm:$0xff] %vm706, %v691
        %712 = vst.msk [vmem:[#allocation3 + $0x28] sm:$0xff] %vm706, %v693
        %713 = vst.msk [vmem:[#allocation3 + $0x30] sm:$0xff] %vm706, %v695
        %714 = vst.msk [vmem:[#allocation3 + $0x38] sm:$0xff] %vm706, %v697
        %v715 = vld [vmem:[%s665 + $0x1] sm:$0xff]
        %v716 = vld [vmem:[%s665 + $0x11] sm:$0xff]
        %v717 = vld [vmem:[%s665 + $0x21] sm:$0xff]
        %v718 = vld [vmem:[%s665 + $0x31] sm:$0xff]
        %v719 = vld [vmem:[%s665 + $0x41] sm:$0xff]
        %v720 = vld [vmem:[%s665 + $0x51] sm:$0xff]
        %v721 = vld [vmem:[%s665 + $0x61] sm:$0xff]
        %v722 = vld [vmem:[%s665 + $0x71] sm:$0xff]
        %731 = vrot.lane.b32.xlu0 %v715, 56
        %v732 = vpop.permute.xlu0 %731
        %733 = vrot.lane.b32.xlu0 %v716, 56
        %v734 = vpop.permute.xlu0 %733
        %735 = vrot.lane.b32.xlu0 %v717, 56
        %v736 = vpop.permute.xlu0 %735
        %737 = vrot.lane.b32.xlu0 %v718, 56
        %v738 = vpop.permute.xlu0 %737
        %739 = vrot.lane.b32.xlu0 %v719, 56
        %v740 = vpop.permute.xlu0 %739
        %741 = vrot.lane.b32.xlu0 %v720, 56
        %v742 = vpop.permute.xlu0 %741
        %743 = vrot.lane.b32.xlu0 %v721, 56
        %v744 = vpop.permute.xlu0 %743
        %745 = vrot.lane.b32.xlu0 %v722, 56
        %v746 = vpop.permute.xlu0 %745
        %vm755 = vcmask 523712
        %756 = vst.msk [vmem:[#allocation3] sm:$0xff] %vm755, %v732
        %757 = vst.msk [vmem:[#allocation3 + $0x8] sm:$0xff] %vm755, %v734
        %758 = vst.msk [vmem:[#allocation3 + $0x10] sm:$0xff] %vm755, %v736
        %759 = vst.msk [vmem:[#allocation3 + $0x18] sm:$0xff] %vm755, %v738
        %760 = vst.msk [vmem:[#allocation3 + $0x20] sm:$0xff] %vm755, %v740
        %761 = vst.msk [vmem:[#allocation3 + $0x28] sm:$0xff] %vm755, %v742
        %762 = vst.msk [vmem:[#allocation3 + $0x30] sm:$0xff] %vm755, %v744
        %763 = vst.msk [vmem:[#allocation3 + $0x38] sm:$0xff] %vm755, %v746
        %v764 = vld [vmem:[%s665 + $0x2] sm:$0xff]
        %v765 = vld [vmem:[%s665 + $0x12] sm:$0xff]
        %v766 = vld [vmem:[%s665 + $0x22] sm:$0xff]
        %v767 = vld [vmem:[%s665 + $0x32] sm:$0xff]
        %v768 = vld [vmem:[%s665 + $0x42] sm:$0xff]
        %v769 = vld [vmem:[%s665 + $0x52] sm:$0xff]
        %v770 = vld [vmem:[%s665 + $0x62] sm:$0xff]
        %v771 = vld [vmem:[%s665 + $0x72] sm:$0xff]
        %780 = vrot.lane.b32.xlu0 %v764, 64
        %v781 = vpop.permute.xlu0 %780
        %782 = vrot.lane.b32.xlu0 %v765, 64
        %v783 = vpop.permute.xlu0 %782
        %784 = vrot.lane.b32.xlu0 %v766, 64
        %v785 = vpop.permute.xlu0 %784
        %786 = vrot.lane.b32.xlu0 %v767, 64
        %v787 = vpop.permute.xlu0 %786
        %788 = vrot.lane.b32.xlu0 %v768, 64
        %v789 = vpop.permute.xlu0 %788
        %790 = vrot.lane.b32.xlu0 %v769, 64
        %v791 = vpop.permute.xlu0 %790
        %792 = vrot.lane.b32.xlu0 %v770, 64
        %v793 = vpop.permute.xlu0 %792
        %794 = vrot.lane.b32.xlu0 %v771, 64
        %v795 = vpop.permute.xlu0 %794
        %vm804 = vcmask 589312
        %805 = vst.msk [vmem:[#allocation3] sm:$0xff] %vm804, %v781
        %806 = vst.msk [vmem:[#allocation3 + $0x8] sm:$0xff] %vm804, %v783
        %807 = vst.msk [vmem:[#allocation3 + $0x10] sm:$0xff] %vm804, %v785
        %808 = vst.msk [vmem:[#allocation3 + $0x18] sm:$0xff] %vm804, %v787
        %809 = vst.msk [vmem:[#allocation3 + $0x20] sm:$0xff] %vm804, %v789
        %810 = vst.msk [vmem:[#allocation3 + $0x28] sm:$0xff] %vm804, %v791
        %811 = vst.msk [vmem:[#allocation3 + $0x30] sm:$0xff] %vm804, %v793
        %812 = vst.msk [vmem:[#allocation3 + $0x38] sm:$0xff] %vm804, %v795
        %v813 = vld [vmem:[#allocation3] sm:$0xff]
        %v814 = vld [vmem:[#allocation3 + $0x8] sm:$0xff]
        %v815 = vld [vmem:[#allocation3 + $0x10] sm:$0xff]
        %v816 = vld [vmem:[#allocation3 + $0x18] sm:$0xff]
        %v817 = vld [vmem:[#allocation3 + $0x20] sm:$0xff]
        %v818 = vld [vmem:[#allocation3 + $0x28] sm:$0xff]
        %v819 = vld [vmem:[#allocation3 + $0x30] sm:$0xff]
        %v820 = vld [vmem:[#allocation3 + $0x38] sm:$0xff]
        %v821 = vpack.c.bf16 %v814, %v813
        %v822 = vpack.c.bf16 %v816, %v815
        %v823 = vpack.c.bf16 %v818, %v817
        %v824 = vpack.c.bf16 %v820, %v819
        %v834 = vunpack.c.l.b16 %v386
        %v835 = vunpack.c.l.b16 %v387
        %v836 = vunpack.c.l.b16 %v388
        %v837 = vunpack.c.l.b16 %v389
        %v838 = vunpack.c.l.b16 %v390
        %v839 = vunpack.c.l.b16 %v391
        %v840 = vunpack.c.l.b16 %v392
        %v841 = vunpack.c.l.b16 %v393
        %v842 = vunpack.c.l.b16 %v394
        %v843 = vpack.c.b16 %v835, %v834
        %v844 = vpack.c.b16 %v837, %v836
        %v845 = vpack.c.b16 %v839, %v838
        %v846 = vpack.c.b16 %v841, %v840
        %v847 = vpack.c.b16 %v842, %v842
        %vm852 = vcmask 588800
        %v854 = vsel %vm852, %v821, 0
        %v857 = vsel %vm852, %v822, 0
        %v860 = vsel %vm852, %v823, 0
        %v863 = vsel %vm852, %v824, 0
        %vm865 = vcmask 1043456
        %v867 = vsel %vm865, %v847, 0
        %869 = vmatprep.subr.bf16.mxu0 0
        %870 = vmatpush1.bf16.msra.mxu0 %v843
        %871 = vmatprep.subr.bf16.mxu0 0
        %872 = vmatpush1.bf16.msra.mxu0 %v844
        %873 = vmatprep.subr.bf16.mxu0 0
        %874 = vmatpush1.bf16.msra.mxu0 %v845
        %875 = vmatprep.subr.bf16.mxu0 0
        %876 = vmatpush1.bf16.msra.mxu0 %v846
        %877 = vmatprep.subr.bf16.mxu0 0
        %878 = vmatpush1.bf16.msra.mxu0 %v867
        %879 = vmatprep.subr.bf16.mxu0 0
        %880 = vmatpush1.bf16.msra.mxu0 0
        %881 = vmatprep.subr.bf16.mxu0 0
        %882 = vmatpush1.bf16.msra.mxu0 0
        %883 = vmatprep.subr.bf16.mxu0 0
        %884 = vmatpush1.bf16.msra.mxu0 0
        %885 = vmatprep.subr.bf16.mxu0 0
        %886 = vmatpush1.bf16.msra.mxu0 0
        %887 = vmatprep.subr.bf16.mxu0 0
        %888 = vmatpush1.bf16.msra.mxu0 0
        %889 = vmatprep.subr.bf16.mxu0 0
        %890 = vmatpush1.bf16.msra.mxu0 0
        %891 = vmatprep.subr.bf16.mxu0 0
        %892 = vmatpush1.bf16.msra.mxu0 0
        %893 = vmatprep.subr.bf16.mxu0 0
        %894 = vmatpush1.bf16.msra.mxu0 0
        %895 = vmatprep.subr.bf16.mxu0 0
        %896 = vmatpush1.bf16.msra.mxu0 0
        %897 = vmatprep.subr.bf16.mxu0 0
        %898 = vmatpush1.bf16.msra.mxu0 0
        %899 = vmatprep.subr.bf16.mxu0 0
        %900 = vmatpush1.bf16.msra.mxu0 0
        %901 = vmatprep.mubr.bf16.mxu0 0
        %902 = vmatmul.mubr.bf16.gmra.mrb[0].mxu0 %v854
        %v903 = vpop.f32.mrb[0].mxu0
        %v904 = vadd.f32 0.0, %v903
        %v905 = vpop.f32.mrb[0].mxu0
        %v906 = vpop.f32.mrb[0].mxu0
        %v907 = vadd.f32 0.0, %v906
        %v908 = vpop.f32.mrb[0].mxu0
        %909 = vmatprep.mubr.bf16.mxu0 0
        %910 = vmatmul.mubr.bf16.gmra.mrb[0].mxu0 %v857
        %v911 = vpop.f32.mrb[0].mxu0
        %v912 = vadd.f32 0.0, %v911
        %v913 = vpop.f32.mrb[0].mxu0
        %v914 = vpop.f32.mrb[0].mxu0
        %v915 = vadd.f32 0.0, %v914
        %v916 = vpop.f32.mrb[0].mxu0
        %917 = vmatprep.mubr.bf16.mxu0 0
        %918 = vmatmul.mubr.bf16.gmra.mrb[0].mxu0 %v860
        %v919 = vpop.f32.mrb[0].mxu0
        %v920 = vadd.f32 0.0, %v919
        %v921 = vpop.f32.mrb[0].mxu0
        %v922 = vpop.f32.mrb[0].mxu0
        %v923 = vadd.f32 0.0, %v922
        %v924 = vpop.f32.mrb[0].mxu0
        %925 = vmatprep.mubr.bf16.mxu0 0
        %926 = vmatmul.mubr.bf16.gmra.mrb[0].mxu0 %v863
        %v927 = vpop.f32.mrb[0].mxu0
        %v928 = vadd.f32 0.0, %v927
        %v929 = vpop.f32.mrb[0].mxu0
        %v930 = vpop.f32.mrb[0].mxu0
        %v931 = vadd.f32 0.0, %v930
        %v932 = vpop.f32.mrb[0].mxu0
        %933 = vdwg.mxu0
        %v934 = vlaneseq
        %v935 = vshrl.u32 %v934, 7
        %v936 = vsub.s32 2, %v935
        %v937 = vrot.slane %v197, %v936
        %v938 = vadd.f32 %v904, %v937
        %v939 = vadd.f32 %v907, %v937
        %v940 = vadd.f32 %v912, %v937
        %v941 = vadd.f32 %v915, %v937
        %v942 = vadd.f32 %v920, %v937
        %v943 = vadd.f32 %v923, %v937
        %v944 = vadd.f32 %v928, %v937
        %v945 = vadd.f32 %v931, %v937
        %954 = vrot.lane.b32.xlu0 %v378, 120
        %v955 = vpop.permute.xlu0 %954
        %956 = vrot.lane.b32.xlu0 %v379, 120
        %v957 = vpop.permute.xlu0 %956
        %958 = vrot.lane.b32.xlu0 %v380, 120
        %v959 = vpop.permute.xlu0 %958
        %960 = vrot.lane.b32.xlu0 %v381, 120
        %v961 = vpop.permute.xlu0 %960
        %962 = vrot.lane.b32.xlu0 %v382, 120
        %v963 = vpop.permute.xlu0 %962
        %964 = vrot.lane.b32.xlu0 %v383, 120
        %v965 = vpop.permute.xlu0 %964
        %966 = vrot.lane.b32.xlu0 %v384, 120
        %v967 = vpop.permute.xlu0 %966
        %968 = vrot.lane.b32.xlu0 %v385, 120
        %v969 = vpop.permute.xlu0 %968
        %v978 = vadd.f32 %v938, %v955
        %v979 = vadd.f32 %v939, %v957
        %v980 = vadd.f32 %v940, %v959
        %v981 = vadd.f32 %v941, %v961
        %v982 = vadd.f32 %v942, %v963
        %v983 = vadd.f32 %v943, %v965
        %v984 = vadd.f32 %v944, %v967
        %v985 = vadd.f32 %v945, %v969
        %v986 = vmax.f32 %v978, 0.0
        %v987 = vmax.f32 %v979, 0.0
        %v988 = vmax.f32 %v980, 0.0
        %v989 = vmax.f32 %v981, 0.0
        %v990 = vmax.f32 %v982, 0.0
        %v991 = vmax.f32 %v983, 0.0
        %v992 = vmax.f32 %v984, 0.0
        %v993 = vmax.f32 %v985, 0.0
        %s994 = scalar_lea.vmem %s2, 36
        %v995 = vld [vmem:[%s994] sm:$0xf]
        %v996 = vld [vmem:[%s994 + $0x4] sm:$0xf]
        %v997 = vld [vmem:[%s994 + $0x8] sm:$0xf]
        %v998 = vld [vmem:[%s994 + $0xc] sm:$0xf]
        %v999 = vld [vmem:[%s994 + $0x10] sm:$0xf]
        %v1000 = vld [vmem:[%s994 + $0x14] sm:$0xf]
        %v1001 = vld [vmem:[%s994 + $0x18] sm:$0xf]
        %v1002 = vld [vmem:[%s994 + $0x1c] sm:$0xf]
        %v1003 = vld [vmem:[%s994 + $0x20] sm:$0xf]
        %1004 = vst.msk [vmem:[%s395 + $0x1] sm:$0xff] %vm198, %v986
        %1005 = vst.msk [vmem:[%s395 + $0x11] sm:$0xff] %vm198, %v987
        %1006 = vst.msk [vmem:[%s395 + $0x21] sm:$0xff] %vm198, %v988
        %1007 = vst.msk [vmem:[%s395 + $0x31] sm:$0xff] %vm198, %v989
        %1008 = vst.msk [vmem:[%s395 + $0x41] sm:$0xff] %vm198, %v990
        %1009 = vst.msk [vmem:[%s395 + $0x51] sm:$0xff] %vm198, %v991
        %1010 = vst.msk [vmem:[%s395 + $0x61] sm:$0xff] %vm198, %v992
        %1011 = vst.msk [vmem:[%s395 + $0x71] sm:$0xff] %vm198, %v993
        %v1012 = vld [vmem:[#allocation2] sm:$0xff]
        %v1013 = vld [vmem:[#allocation2 + $0x10] sm:$0xff]
        %v1014 = vld [vmem:[#allocation2 + $0x20] sm:$0xff]
        %v1015 = vld [vmem:[#allocation2 + $0x30] sm:$0xff]
        %v1016 = vld [vmem:[#allocation2 + $0x40] sm:$0xff]
        %v1017 = vld [vmem:[#allocation2 + $0x50] sm:$0xff]
        %v1018 = vld [vmem:[#allocation2 + $0x60] sm:$0xff]
        %v1019 = vld [vmem:[#allocation2 + $0x70] sm:$0xff]
        %1020 = vst.msk [vmem:[#allocation3] sm:$0xff] %vm198, %v1012
        %1021 = vst.msk [vmem:[#allocation3 + $0x8] sm:$0xff] %vm198, %v1013
        %1022 = vst.msk [vmem:[#allocation3 + $0x10] sm:$0xff] %vm198, %v1014
        %1023 = vst.msk [vmem:[#allocation3 + $0x18] sm:$0xff] %vm198, %v1015
        %1024 = vst.msk [vmem:[#allocation3 + $0x20] sm:$0xff] %vm198, %v1016
        %1025 = vst.msk [vmem:[#allocation3 + $0x28] sm:$0xff] %vm198, %v1017
        %1026 = vst.msk [vmem:[#allocation3 + $0x30] sm:$0xff] %vm198, %v1018
        %1027 = vst.msk [vmem:[#allocation3 + $0x38] sm:$0xff] %vm198, %v1019
        %v1028 = vld [vmem:[#allocation2 + $0x1] sm:$0xff]
        %v1029 = vld [vmem:[#allocation2 + $0x11] sm:$0xff]
        %v1030 = vld [vmem:[#allocation2 + $0x21] sm:$0xff]
        %v1031 = vld [vmem:[#allocation2 + $0x31] sm:$0xff]
        %v1032 = vld [vmem:[#allocation2 + $0x41] sm:$0xff]
        %v1033 = vld [vmem:[#allocation2 + $0x51] sm:$0xff]
        %v1034 = vld [vmem:[#allocation2 + $0x61] sm:$0xff]
        %v1035 = vld [vmem:[#allocation2 + $0x71] sm:$0xff]
        %1044 = vrot.lane.b32.xlu0 %v1028, 8
        %v1045 = vpop.permute.xlu0 %1044
        %1046 = vrot.lane.b32.xlu0 %v1029, 8
        %v1047 = vpop.permute.xlu0 %1046
        %1048 = vrot.lane.b32.xlu0 %v1030, 8
        %v1049 = vpop.permute.xlu0 %1048
        %1050 = vrot.lane.b32.xlu0 %v1031, 8
        %v1051 = vpop.permute.xlu0 %1050
        %1052 = vrot.lane.b32.xlu0 %v1032, 8
        %v1053 = vpop.permute.xlu0 %1052
        %1054 = vrot.lane.b32.xlu0 %v1033, 8
        %v1055 = vpop.permute.xlu0 %1054
        %1056 = vrot.lane.b32.xlu0 %v1034, 8
        %v1057 = vpop.permute.xlu0 %1056
        %1058 = vrot.lane.b32.xlu0 %v1035, 8
        %v1059 = vpop.permute.xlu0 %1058
        %1068 = vst.msk [vmem:[#allocation3] sm:$0xff] %vm460, %v1045
        %1069 = vst.msk [vmem:[#allocation3 + $0x8] sm:$0xff] %vm460, %v1047
        %1070 = vst.msk [vmem:[#allocation3 + $0x10] sm:$0xff] %vm460, %v1049
        %1071 = vst.msk [vmem:[#allocation3 + $0x18] sm:$0xff] %vm460, %v1051
        %1072 = vst.msk [vmem:[#allocation3 + $0x20] sm:$0xff] %vm460, %v1053
        %1073 = vst.msk [vmem:[#allocation3 + $0x28] sm:$0xff] %vm460, %v1055
        %1074 = vst.msk [vmem:[#allocation3 + $0x30] sm:$0xff] %vm460, %v1057
        %1075 = vst.msk [vmem:[#allocation3 + $0x38] sm:$0xff] %vm460, %v1059
        %v1076 = vld [vmem:[#allocation2 + $0x2] sm:$0xff]
        %v1077 = vld [vmem:[#allocation2 + $0x12] sm:$0xff]
        %v1078 = vld [vmem:[#allocation2 + $0x22] sm:$0xff]
        %v1079 = vld [vmem:[#allocation2 + $0x32] sm:$0xff]
        %v1080 = vld [vmem:[#allocation2 + $0x42] sm:$0xff]
        %v1081 = vld [vmem:[#allocation2 + $0x52] sm:$0xff]
        %v1082 = vld [vmem:[#allocation2 + $0x62] sm:$0xff]
        %v1083 = vld [vmem:[#allocation2 + $0x72] sm:$0xff]
        %1092 = vrot.lane.b32.xlu0 %v1076, 16
        %v1093 = vpop.permute.xlu0 %1092
        %1094 = vrot.lane.b32.xlu0 %v1077, 16
        %v1095 = vpop.permute.xlu0 %1094
        %1096 = vrot.lane.b32.xlu0 %v1078, 16
        %v1097 = vpop.permute.xlu0 %1096
        %1098 = vrot.lane.b32.xlu0 %v1079, 16
        %v1099 = vpop.permute.xlu0 %1098
        %1100 = vrot.lane.b32.xlu0 %v1080, 16
        %v1101 = vpop.permute.xlu0 %1100
        %1102 = vrot.lane.b32.xlu0 %v1081, 16
        %v1103 = vpop.permute.xlu0 %1102
        %1104 = vrot.lane.b32.xlu0 %v1082, 16
        %v1105 = vpop.permute.xlu0 %1104
        %1106 = vrot.lane.b32.xlu0 %v1083, 16
        %v1107 = vpop.permute.xlu0 %1106
        %1116 = vst.msk [vmem:[#allocation3] sm:$0xff] %vm509, %v1093
        %1117 = vst.msk [vmem:[#allocation3 + $0x8] sm:$0xff] %vm509, %v1095
        %1118 = vst.msk [vmem:[#allocation3 + $0x10] sm:$0xff] %vm509, %v1097
        %1119 = vst.msk [vmem:[#allocation3 + $0x18] sm:$0xff] %vm509, %v1099
        %1120 = vst.msk [vmem:[#allocation3 + $0x20] sm:$0xff] %vm509, %v1101
        %1121 = vst.msk [vmem:[#allocation3 + $0x28] sm:$0xff] %vm509, %v1103
        %1122 = vst.msk [vmem:[#allocation3 + $0x30] sm:$0xff] %vm509, %v1105
        %1123 = vst.msk [vmem:[#allocation3 + $0x38] sm:$0xff] %vm509, %v1107
        %v1124 = vld [vmem:[%s395] sm:$0xff]
        %v1125 = vld [vmem:[%s395 + $0x10] sm:$0xff]
        %v1126 = vld [vmem:[%s395 + $0x20] sm:$0xff]
        %v1127 = vld [vmem:[%s395 + $0x30] sm:$0xff]
        %v1128 = vld [vmem:[%s395 + $0x40] sm:$0xff]
        %v1129 = vld [vmem:[%s395 + $0x50] sm:$0xff]
        %v1130 = vld [vmem:[%s395 + $0x60] sm:$0xff]
        %v1131 = vld [vmem:[%s395 + $0x70] sm:$0xff]
        %1140 = vrot.lane.b32.xlu0 %v1124, 24
        %v1141 = vpop.permute.xlu0 %1140
        %1142 = vrot.lane.b32.xlu0 %v1125, 24
        %v1143 = vpop.permute.xlu0 %1142
        %1144 = vrot.lane.b32.xlu0 %v1126, 24
        %v1145 = vpop.permute.xlu0 %1144
        %1146 = vrot.lane.b32.xlu0 %v1127, 24
        %v1147 = vpop.permute.xlu0 %1146
        %1148 = vrot.lane.b32.xlu0 %v1128, 24
        %v1149 = vpop.permute.xlu0 %1148
        %1150 = vrot.lane.b32.xlu0 %v1129, 24
        %v1151 = vpop.permute.xlu0 %1150
        %1152 = vrot.lane.b32.xlu0 %v1130, 24
        %v1153 = vpop.permute.xlu0 %1152
        %1154 = vrot.lane.b32.xlu0 %v1131, 24
        %v1155 = vpop.permute.xlu0 %1154
        %1164 = vst.msk [vmem:[#allocation3] sm:$0xff] %vm558, %v1141
        %1165 = vst.msk [vmem:[#allocation3 + $0x8] sm:$0xff] %vm558, %v1143
        %1166 = vst.msk [vmem:[#allocation3 + $0x10] sm:$0xff] %vm558, %v1145
        %1167 = vst.msk [vmem:[#allocation3 + $0x18] sm:$0xff] %vm558, %v1147
        %1168 = vst.msk [vmem:[#allocation3 + $0x20] sm:$0xff] %vm558, %v1149
        %1169 = vst.msk [vmem:[#allocation3 + $0x28] sm:$0xff] %vm558, %v1151
        %1170 = vst.msk [vmem:[#allocation3 + $0x30] sm:$0xff] %vm558, %v1153
        %1171 = vst.msk [vmem:[#allocation3 + $0x38] sm:$0xff] %vm558, %v1155
        %v1172 = vld [vmem:[%s395 + $0x1] sm:$0xff]
        %v1173 = vld [vmem:[%s395 + $0x11] sm:$0xff]
        %v1174 = vld [vmem:[%s395 + $0x21] sm:$0xff]
        %v1175 = vld [vmem:[%s395 + $0x31] sm:$0xff]
        %v1176 = vld [vmem:[%s395 + $0x41] sm:$0xff]
        %v1177 = vld [vmem:[%s395 + $0x51] sm:$0xff]
        %v1178 = vld [vmem:[%s395 + $0x61] sm:$0xff]
        %v1179 = vld [vmem:[%s395 + $0x71] sm:$0xff]
        %1188 = vrot.lane.b32.xlu0 %v1172, 32
        %v1189 = vpop.permute.xlu0 %1188
        %1190 = vrot.lane.b32.xlu0 %v1173, 32
        %v1191 = vpop.permute.xlu0 %1190
        %1192 = vrot.lane.b32.xlu0 %v1174, 32
        %v1193 = vpop.permute.xlu0 %1192
        %1194 = vrot.lane.b32.xlu0 %v1175, 32
        %v1195 = vpop.permute.xlu0 %1194
        %1196 = vrot.lane.b32.xlu0 %v1176, 32
        %v1197 = vpop.permute.xlu0 %1196
        %1198 = vrot.lane.b32.xlu0 %v1177, 32
        %v1199 = vpop.permute.xlu0 %1198
        %1200 = vrot.lane.b32.xlu0 %v1178, 32
        %v1201 = vpop.permute.xlu0 %1200
        %1202 = vrot.lane.b32.xlu0 %v1179, 32
        %v1203 = vpop.permute.xlu0 %1202
        %1212 = vst.msk [vmem:[#allocation3] sm:$0xff] %vm607, %v1189
        %1213 = vst.msk [vmem:[#allocation3 + $0x8] sm:$0xff] %vm607, %v1191
        %1214 = vst.msk [vmem:[#allocation3 + $0x10] sm:$0xff] %vm607, %v1193
        %1215 = vst.msk [vmem:[#allocation3 + $0x18] sm:$0xff] %vm607, %v1195
        %1216 = vst.msk [vmem:[#allocation3 + $0x20] sm:$0xff] %vm607, %v1197
        %1217 = vst.msk [vmem:[#allocation3 + $0x28] sm:$0xff] %vm607, %v1199
        %1218 = vst.msk [vmem:[#allocation3 + $0x30] sm:$0xff] %vm607, %v1201
        %1219 = vst.msk [vmem:[#allocation3 + $0x38] sm:$0xff] %vm607, %v1203
        %v1220 = vld [vmem:[%s395 + $0x2] sm:$0xff]
        %v1221 = vld [vmem:[%s395 + $0x12] sm:$0xff]
        %v1222 = vld [vmem:[%s395 + $0x22] sm:$0xff]
        %v1223 = vld [vmem:[%s395 + $0x32] sm:$0xff]
        %v1224 = vld [vmem:[%s395 + $0x42] sm:$0xff]
        %v1225 = vld [vmem:[%s395 + $0x52] sm:$0xff]
        %v1226 = vld [vmem:[%s395 + $0x62] sm:$0xff]
        %v1227 = vld [vmem:[%s395 + $0x72] sm:$0xff]
        %1236 = vrot.lane.b32.xlu0 %v1220, 40
        %v1237 = vpop.permute.xlu0 %1236
        %1238 = vrot.lane.b32.xlu0 %v1221, 40
        %v1239 = vpop.permute.xlu0 %1238
        %1240 = vrot.lane.b32.xlu0 %v1222, 40
        %v1241 = vpop.permute.xlu0 %1240
        %1242 = vrot.lane.b32.xlu0 %v1223, 40
        %v1243 = vpop.permute.xlu0 %1242
        %1244 = vrot.lane.b32.xlu0 %v1224, 40
        %v1245 = vpop.permute.xlu0 %1244
        %1246 = vrot.lane.b32.xlu0 %v1225, 40
        %v1247 = vpop.permute.xlu0 %1246
        %1248 = vrot.lane.b32.xlu0 %v1226, 40
        %v1249 = vpop.permute.xlu0 %1248
        %1250 = vrot.lane.b32.xlu0 %v1227, 40
        %v1251 = vpop.permute.xlu0 %1250
        %1260 = vst.msk [vmem:[#allocation3] sm:$0xff] %vm656, %v1237
        %1261 = vst.msk [vmem:[#allocation3 + $0x8] sm:$0xff] %vm656, %v1239
        %1262 = vst.msk [vmem:[#allocation3 + $0x10] sm:$0xff] %vm656, %v1241
        %1263 = vst.msk [vmem:[#allocation3 + $0x18] sm:$0xff] %vm656, %v1243
        %1264 = vst.msk [vmem:[#allocation3 + $0x20] sm:$0xff] %vm656, %v1245
        %1265 = vst.msk [vmem:[#allocation3 + $0x28] sm:$0xff] %vm656, %v1247
        %1266 = vst.msk [vmem:[#allocation3 + $0x30] sm:$0xff] %vm656, %v1249
        %1267 = vst.msk [vmem:[#allocation3 + $0x38] sm:$0xff] %vm656, %v1251
        %v1268 = vld [vmem:[%s665] sm:$0xff]
        %v1269 = vld [vmem:[%s665 + $0x10] sm:$0xff]
        %v1270 = vld [vmem:[%s665 + $0x20] sm:$0xff]
        %v1271 = vld [vmem:[%s665 + $0x30] sm:$0xff]
        %v1272 = vld [vmem:[%s665 + $0x40] sm:$0xff]
        %v1273 = vld [vmem:[%s665 + $0x50] sm:$0xff]
        %v1274 = vld [vmem:[%s665 + $0x60] sm:$0xff]
        %v1275 = vld [vmem:[%s665 + $0x70] sm:$0xff]
        %1284 = vrot.lane.b32.xlu0 %v1268, 48
        %v1285 = vpop.permute.xlu0 %1284
        %1286 = vrot.lane.b32.xlu0 %v1269, 48
        %v1287 = vpop.permute.xlu0 %1286
        %1288 = vrot.lane.b32.xlu0 %v1270, 48
        %v1289 = vpop.permute.xlu0 %1288
        %1290 = vrot.lane.b32.xlu0 %v1271, 48
        %v1291 = vpop.permute.xlu0 %1290
        %1292 = vrot.lane.b32.xlu0 %v1272, 48
        %v1293 = vpop.permute.xlu0 %1292
        %1294 = vrot.lane.b32.xlu0 %v1273, 48
        %v1295 = vpop.permute.xlu0 %1294
        %1296 = vrot.lane.b32.xlu0 %v1274, 48
        %v1297 = vpop.permute.xlu0 %1296
        %1298 = vrot.lane.b32.xlu0 %v1275, 48
        %v1299 = vpop.permute.xlu0 %1298
        %1308 = vst.msk [vmem:[#allocation3] sm:$0xff] %vm706, %v1285
        %1309 = vst.msk [vmem:[#allocation3 + $0x8] sm:$0xff] %vm706, %v1287
        %1310 = vst.msk [vmem:[#allocation3 + $0x10] sm:$0xff] %vm706, %v1289
        %1311 = vst.msk [vmem:[#allocation3 + $0x18] sm:$0xff] %vm706, %v1291
        %1312 = vst.msk [vmem:[#allocation3 + $0x20] sm:$0xff] %vm706, %v1293
        %1313 = vst.msk [vmem:[#allocation3 + $0x28] sm:$0xff] %vm706, %v1295
        %1314 = vst.msk [vmem:[#allocation3 + $0x30] sm:$0xff] %vm706, %v1297
        %1315 = vst.msk [vmem:[#allocation3 + $0x38] sm:$0xff] %vm706, %v1299
        %v1316 = vld [vmem:[%s665 + $0x1] sm:$0xff]
        %v1317 = vld [vmem:[%s665 + $0x11] sm:$0xff]
        %v1318 = vld [vmem:[%s665 + $0x21] sm:$0xff]
        %v1319 = vld [vmem:[%s665 + $0x31] sm:$0xff]
        %v1320 = vld [vmem:[%s665 + $0x41] sm:$0xff]
        %v1321 = vld [vmem:[%s665 + $0x51] sm:$0xff]
        %v1322 = vld [vmem:[%s665 + $0x61] sm:$0xff]
        %v1323 = vld [vmem:[%s665 + $0x71] sm:$0xff]
        %1332 = vrot.lane.b32.xlu0 %v1316, 56
        %v1333 = vpop.permute.xlu0 %1332
        %1334 = vrot.lane.b32.xlu0 %v1317, 56
        %v1335 = vpop.permute.xlu0 %1334
        %1336 = vrot.lane.b32.xlu0 %v1318, 56
        %v1337 = vpop.permute.xlu0 %1336
        %1338 = vrot.lane.b32.xlu0 %v1319, 56
        %v1339 = vpop.permute.xlu0 %1338
        %1340 = vrot.lane.b32.xlu0 %v1320, 56
        %v1341 = vpop.permute.xlu0 %1340
        %1342 = vrot.lane.b32.xlu0 %v1321, 56
        %v1343 = vpop.permute.xlu0 %1342
        %1344 = vrot.lane.b32.xlu0 %v1322, 56
        %v1345 = vpop.permute.xlu0 %1344
        %1346 = vrot.lane.b32.xlu0 %v1323, 56
        %v1347 = vpop.permute.xlu0 %1346
        %1356 = vst.msk [vmem:[#allocation3] sm:$0xff] %vm755, %v1333
        %1357 = vst.msk [vmem:[#allocation3 + $0x8] sm:$0xff] %vm755, %v1335
        %1358 = vst.msk [vmem:[#allocation3 + $0x10] sm:$0xff] %vm755, %v1337
        %1359 = vst.msk [vmem:[#allocation3 + $0x18] sm:$0xff] %vm755, %v1339
        %1360 = vst.msk [vmem:[#allocation3 + $0x20] sm:$0xff] %vm755, %v1341
        %1361 = vst.msk [vmem:[#allocation3 + $0x28] sm:$0xff] %vm755, %v1343
        %1362 = vst.msk [vmem:[#allocation3 + $0x30] sm:$0xff] %vm755, %v1345
        %1363 = vst.msk [vmem:[#allocation3 + $0x38] sm:$0xff] %vm755, %v1347
        %v1364 = vld [vmem:[%s665 + $0x2] sm:$0xff]
        %v1365 = vld [vmem:[%s665 + $0x12] sm:$0xff]
        %v1366 = vld [vmem:[%s665 + $0x22] sm:$0xff]
        %v1367 = vld [vmem:[%s665 + $0x32] sm:$0xff]
        %v1368 = vld [vmem:[%s665 + $0x42] sm:$0xff]
        %v1369 = vld [vmem:[%s665 + $0x52] sm:$0xff]
        %v1370 = vld [vmem:[%s665 + $0x62] sm:$0xff]
        %v1371 = vld [vmem:[%s665 + $0x72] sm:$0xff]
        %1380 = vrot.lane.b32.xlu0 %v1364, 64
        %v1381 = vpop.permute.xlu0 %1380
        %1382 = vrot.lane.b32.xlu0 %v1365, 64
        %v1383 = vpop.permute.xlu0 %1382
        %1384 = vrot.lane.b32.xlu0 %v1366, 64
        %v1385 = vpop.permute.xlu0 %1384
        %1386 = vrot.lane.b32.xlu0 %v1367, 64
        %v1387 = vpop.permute.xlu0 %1386
        %1388 = vrot.lane.b32.xlu0 %v1368, 64
        %v1389 = vpop.permute.xlu0 %1388
        %1390 = vrot.lane.b32.xlu0 %v1369, 64
        %v1391 = vpop.permute.xlu0 %1390
        %1392 = vrot.lane.b32.xlu0 %v1370, 64
        %v1393 = vpop.permute.xlu0 %1392
        %1394 = vrot.lane.b32.xlu0 %v1371, 64
        %v1395 = vpop.permute.xlu0 %1394
        %1404 = vst.msk [vmem:[#allocation3] sm:$0xff] %vm804, %v1381
        %1405 = vst.msk [vmem:[#allocation3 + $0x8] sm:$0xff] %vm804, %v1383
        %1406 = vst.msk [vmem:[#allocation3 + $0x10] sm:$0xff] %vm804, %v1385
        %1407 = vst.msk [vmem:[#allocation3 + $0x18] sm:$0xff] %vm804, %v1387
        %1408 = vst.msk [vmem:[#allocation3 + $0x20] sm:$0xff] %vm804, %v1389
        %1409 = vst.msk [vmem:[#allocation3 + $0x28] sm:$0xff] %vm804, %v1391
        %1410 = vst.msk [vmem:[#allocation3 + $0x30] sm:$0xff] %vm804, %v1393
        %1411 = vst.msk [vmem:[#allocation3 + $0x38] sm:$0xff] %vm804, %v1395
        %v1412 = vld [vmem:[#allocation3] sm:$0xff]
        %v1413 = vld [vmem:[#allocation3 + $0x8] sm:$0xff]
        %v1414 = vld [vmem:[#allocation3 + $0x10] sm:$0xff]
        %v1415 = vld [vmem:[#allocation3 + $0x18] sm:$0xff]
        %v1416 = vld [vmem:[#allocation3 + $0x20] sm:$0xff]
        %v1417 = vld [vmem:[#allocation3 + $0x28] sm:$0xff]
        %v1418 = vld [vmem:[#allocation3 + $0x30] sm:$0xff]
        %v1419 = vld [vmem:[#allocation3 + $0x38] sm:$0xff]
        %v1420 = vpack.c.bf16 %v1413, %v1412
        %v1421 = vpack.c.bf16 %v1415, %v1414
        %v1422 = vpack.c.bf16 %v1417, %v1416
        %v1423 = vpack.c.bf16 %v1419, %v1418
        %v1433 = vunpack.c.l.b16 %v995
        %v1434 = vunpack.c.l.b16 %v996
        %v1435 = vunpack.c.l.b16 %v997
        %v1436 = vunpack.c.l.b16 %v998
        %v1437 = vunpack.c.l.b16 %v999
        %v1438 = vunpack.c.l.b16 %v1000
        %v1439 = vunpack.c.l.b16 %v1001
        %v1440 = vunpack.c.l.b16 %v1002
        %v1441 = vunpack.c.l.b16 %v1003
        %v1442 = vpack.c.b16 %v1434, %v1433
        %v1443 = vpack.c.b16 %v1436, %v1435
        %v1444 = vpack.c.b16 %v1438, %v1437
        %v1445 = vpack.c.b16 %v1440, %v1439
        %v1446 = vpack.c.b16 %v1441, %v1441
        %v1452 = vsel %vm852, %v1420, 0
        %v1455 = vsel %vm852, %v1421, 0
        %v1458 = vsel %vm852, %v1422, 0
        %v1461 = vsel %vm852, %v1423, 0
        %v1464 = vsel %vm865, %v1446, 0
        %1466 = vmatprep.subr.bf16.mxu0 0
        %1467 = vmatpush1.bf16.msra.mxu0 %v1442
        %1468 = vmatprep.subr.bf16.mxu0 0
        %1469 = vmatpush1.bf16.msra.mxu0 %v1443
        %1470 = vmatprep.subr.bf16.mxu0 0
        %1471 = vmatpush1.bf16.msra.mxu0 %v1444
        %1472 = vmatprep.subr.bf16.mxu0 0
        %1473 = vmatpush1.bf16.msra.mxu0 %v1445
        %1474 = vmatprep.subr.bf16.mxu0 0
        %1475 = vmatpush1.bf16.msra.mxu0 %v1464
        %1476 = vmatprep.subr.bf16.mxu0 0
        %1477 = vmatpush1.bf16.msra.mxu0 0
        %1478 = vmatprep.subr.bf16.mxu0 0
        %1479 = vmatpush1.bf16.msra.mxu0 0
        %1480 = vmatprep.subr.bf16.mxu0 0
        %1481 = vmatpush1.bf16.msra.mxu0 0
        %1482 = vmatprep.subr.bf16.mxu0 0
        %1483 = vmatpush1.bf16.msra.mxu0 0
        %1484 = vmatprep.subr.bf16.mxu0 0
        %1485 = vmatpush1.bf16.msra.mxu0 0
        %1486 = vmatprep.subr.bf16.mxu0 0
        %1487 = vmatpush1.bf16.msra.mxu0 0
        %1488 = vmatprep.subr.bf16.mxu0 0
        %1489 = vmatpush1.bf16.msra.mxu0 0
        %1490 = vmatprep.subr.bf16.mxu0 0
        %1491 = vmatpush1.bf16.msra.mxu0 0
        %1492 = vmatprep.subr.bf16.mxu0 0
        %1493 = vmatpush1.bf16.msra.mxu0 0
        %1494 = vmatprep.subr.bf16.mxu0 0
        %1495 = vmatpush1.bf16.msra.mxu0 0
        %1496 = vmatprep.subr.bf16.mxu0 0
        %1497 = vmatpush1.bf16.msra.mxu0 0
        %1498 = vmatprep.mubr.bf16.mxu0 0
        %1499 = vmatmul.mubr.bf16.gmra.mrb[0].mxu0 %v1452
        %v1500 = vpop.f32.mrb[0].mxu0
        %v1501 = vadd.f32 0.0, %v1500
        %v1502 = vpop.f32.mrb[0].mxu0
        %v1503 = vpop.f32.mrb[0].mxu0
        %v1504 = vadd.f32 0.0, %v1503
        %v1505 = vpop.f32.mrb[0].mxu0
        %1506 = vmatprep.mubr.bf16.mxu0 0
        %1507 = vmatmul.mubr.bf16.gmra.mrb[0].mxu0 %v1455
        %v1508 = vpop.f32.mrb[0].mxu0
        %v1509 = vadd.f32 0.0, %v1508
        %v1510 = vpop.f32.mrb[0].mxu0
        %v1511 = vpop.f32.mrb[0].mxu0
        %v1512 = vadd.f32 0.0, %v1511
        %v1513 = vpop.f32.mrb[0].mxu0
        %1514 = vmatprep.mubr.bf16.mxu0 0
        %1515 = vmatmul.mubr.bf16.gmra.mrb[0].mxu0 %v1458
        %v1516 = vpop.f32.mrb[0].mxu0
        %v1517 = vadd.f32 0.0, %v1516
        %v1518 = vpop.f32.mrb[0].mxu0
        %v1519 = vpop.f32.mrb[0].mxu0
        %v1520 = vadd.f32 0.0, %v1519
        %v1521 = vpop.f32.mrb[0].mxu0
        %1522 = vmatprep.mubr.bf16.mxu0 0
        %1523 = vmatmul.mubr.bf16.gmra.mrb[0].mxu0 %v1461
        %v1524 = vpop.f32.mrb[0].mxu0
        %v1525 = vadd.f32 0.0, %v1524
        %v1526 = vpop.f32.mrb[0].mxu0
        %v1527 = vpop.f32.mrb[0].mxu0
        %v1528 = vadd.f32 0.0, %v1527
        %v1529 = vpop.f32.mrb[0].mxu0
        %1530 = vdwg.mxu0
        %v1531 = vlaneseq
        %v1532 = vshrl.u32 %v1531, 7
        %v1533 = vsub.s32 3, %v1532
        %v1534 = vrot.slane %v197, %v1533
        %v1535 = vadd.f32 %v1501, %v1534
        %v1536 = vadd.f32 %v1504, %v1534
        %v1537 = vadd.f32 %v1509, %v1534
        %v1538 = vadd.f32 %v1512, %v1534
        %v1539 = vadd.f32 %v1517, %v1534
        %v1540 = vadd.f32 %v1520, %v1534
        %v1541 = vadd.f32 %v1525, %v1534
        %v1542 = vadd.f32 %v1528, %v1534
        %v1543 = vmax.f32 %v1535, 0.0
        %v1544 = vmax.f32 %v1536, 0.0
        %v1545 = vmax.f32 %v1537, 0.0
        %v1546 = vmax.f32 %v1538, 0.0
        %v1547 = vmax.f32 %v1539, 0.0
        %v1548 = vmax.f32 %v1540, 0.0
        %v1549 = vmax.f32 %v1541, 0.0
        %v1550 = vmax.f32 %v1542, 0.0
        %s1551 = scalar_lea.vmem %s2, 72
        %v1552 = vld [vmem:[%s1551] sm:$0xf]
        %v1553 = vld [vmem:[%s1551 + $0x4] sm:$0xf]
        %v1554 = vld [vmem:[%s1551 + $0x8] sm:$0xf]
        %v1555 = vld [vmem:[%s1551 + $0xc] sm:$0xf]
        %v1556 = vld [vmem:[%s1551 + $0x10] sm:$0xf]
        %v1557 = vld [vmem:[%s1551 + $0x14] sm:$0xf]
        %v1558 = vld [vmem:[%s1551 + $0x18] sm:$0xf]
        %v1559 = vld [vmem:[%s1551 + $0x1c] sm:$0xf]
        %v1560 = vld [vmem:[%s1551 + $0x20] sm:$0xf]
        %1561 = vst.msk [vmem:[%s395 + $0x1] sm:$0xff] %vm198, %v1543
        %1562 = vst.msk [vmem:[%s395 + $0x11] sm:$0xff] %vm198, %v1544
        %1563 = vst.msk [vmem:[%s395 + $0x21] sm:$0xff] %vm198, %v1545
        %1564 = vst.msk [vmem:[%s395 + $0x31] sm:$0xff] %vm198, %v1546
        %1565 = vst.msk [vmem:[%s395 + $0x41] sm:$0xff] %vm198, %v1547
        %1566 = vst.msk [vmem:[%s395 + $0x51] sm:$0xff] %vm198, %v1548
        %1567 = vst.msk [vmem:[%s395 + $0x61] sm:$0xff] %vm198, %v1549
        %1568 = vst.msk [vmem:[%s395 + $0x71] sm:$0xff] %vm198, %v1550
        %v1569 = vld [vmem:[#allocation2] sm:$0xff]
        %v1570 = vld [vmem:[#allocation2 + $0x10] sm:$0xff]
        %v1571 = vld [vmem:[#allocation2 + $0x20] sm:$0xff]
        %v1572 = vld [vmem:[#allocation2 + $0x30] sm:$0xff]
        %v1573 = vld [vmem:[#allocation2 + $0x40] sm:$0xff]
        %v1574 = vld [vmem:[#allocation2 + $0x50] sm:$0xff]
        %v1575 = vld [vmem:[#allocation2 + $0x60] sm:$0xff]
        %v1576 = vld [vmem:[#allocation2 + $0x70] sm:$0xff]
        %1577 = vst.msk [vmem:[#allocation3] sm:$0xff] %vm198, %v1569
        %1578 = vst.msk [vmem:[#allocation3 + $0x8] sm:$0xff] %vm198, %v1570
        %1579 = vst.msk [vmem:[#allocation3 + $0x10] sm:$0xff] %vm198, %v1571
        %1580 = vst.msk [vmem:[#allocation3 + $0x18] sm:$0xff] %vm198, %v1572
        %1581 = vst.msk [vmem:[#allocation3 + $0x20] sm:$0xff] %vm198, %v1573
        %1582 = vst.msk [vmem:[#allocation3 + $0x28] sm:$0xff] %vm198, %v1574
        %1583 = vst.msk [vmem:[#allocation3 + $0x30] sm:$0xff] %vm198, %v1575
        %1584 = vst.msk [vmem:[#allocation3 + $0x38] sm:$0xff] %vm198, %v1576
        %v1585 = vld [vmem:[#allocation2 + $0x1] sm:$0xff]
        %v1586 = vld [vmem:[#allocation2 + $0x11] sm:$0xff]
        %v1587 = vld [vmem:[#allocation2 + $0x21] sm:$0xff]
        %v1588 = vld [vmem:[#allocation2 + $0x31] sm:$0xff]
        %v1589 = vld [vmem:[#allocation2 + $0x41] sm:$0xff]
        %v1590 = vld [vmem:[#allocation2 + $0x51] sm:$0xff]
        %v1591 = vld [vmem:[#allocation2 + $0x61] sm:$0xff]
        %v1592 = vld [vmem:[#allocation2 + $0x71] sm:$0xff]
        %1601 = vrot.lane.b32.xlu0 %v1585, 8
        %v1602 = vpop.permute.xlu0 %1601
        %1603 = vrot.lane.b32.xlu0 %v1586, 8
        %v1604 = vpop.permute.xlu0 %1603
        %1605 = vrot.lane.b32.xlu0 %v1587, 8
        %v1606 = vpop.permute.xlu0 %1605
        %1607 = vrot.lane.b32.xlu0 %v1588, 8
        %v1608 = vpop.permute.xlu0 %1607
        %1609 = vrot.lane.b32.xlu0 %v1589, 8
        %v1610 = vpop.permute.xlu0 %1609
        %1611 = vrot.lane.b32.xlu0 %v1590, 8
        %v1612 = vpop.permute.xlu0 %1611
        %1613 = vrot.lane.b32.xlu0 %v1591, 8
        %v1614 = vpop.permute.xlu0 %1613
        %1615 = vrot.lane.b32.xlu0 %v1592, 8
        %v1616 = vpop.permute.xlu0 %1615
        %1625 = vst.msk [vmem:[#allocation3] sm:$0xff] %vm460, %v1602
        %1626 = vst.msk [vmem:[#allocation3 + $0x8] sm:$0xff] %vm460, %v1604
        %1627 = vst.msk [vmem:[#allocation3 + $0x10] sm:$0xff] %vm460, %v1606
        %1628 = vst.msk [vmem:[#allocation3 + $0x18] sm:$0xff] %vm460, %v1608
        %1629 = vst.msk [vmem:[#allocation3 + $0x20] sm:$0xff] %vm460, %v1610
        %1630 = vst.msk [vmem:[#allocation3 + $0x28] sm:$0xff] %vm460, %v1612
        %1631 = vst.msk [vmem:[#allocation3 + $0x30] sm:$0xff] %vm460, %v1614
        %1632 = vst.msk [vmem:[#allocation3 + $0x38] sm:$0xff] %vm460, %v1616
        %v1633 = vld [vmem:[#allocation2 + $0x2] sm:$0xff]
        %v1634 = vld [vmem:[#allocation2 + $0x12] sm:$0xff]
        %v1635 = vld [vmem:[#allocation2 + $0x22] sm:$0xff]
        %v1636 = vld [vmem:[#allocation2 + $0x32] sm:$0xff]
        %v1637 = vld [vmem:[#allocation2 + $0x42] sm:$0xff]
        %v1638 = vld [vmem:[#allocation2 + $0x52] sm:$0xff]
        %v1639 = vld [vmem:[#allocation2 + $0x62] sm:$0xff]
        %v1640 = vld [vmem:[#allocation2 + $0x72] sm:$0xff]
        %1649 = vrot.lane.b32.xlu0 %v1633, 16
        %v1650 = vpop.permute.xlu0 %1649
        %1651 = vrot.lane.b32.xlu0 %v1634, 16
        %v1652 = vpop.permute.xlu0 %1651
        %1653 = vrot.lane.b32.xlu0 %v1635, 16
        %v1654 = vpop.permute.xlu0 %1653
        %1655 = vrot.lane.b32.xlu0 %v1636, 16
        %v1656 = vpop.permute.xlu0 %1655
        %1657 = vrot.lane.b32.xlu0 %v1637, 16
        %v1658 = vpop.permute.xlu0 %1657
        %1659 = vrot.lane.b32.xlu0 %v1638, 16
        %v1660 = vpop.permute.xlu0 %1659
        %1661 = vrot.lane.b32.xlu0 %v1639, 16
        %v1662 = vpop.permute.xlu0 %1661
        %1663 = vrot.lane.b32.xlu0 %v1640, 16
        %v1664 = vpop.permute.xlu0 %1663
        %1673 = vst.msk [vmem:[#allocation3] sm:$0xff] %vm509, %v1650
        %1674 = vst.msk [vmem:[#allocation3 + $0x8] sm:$0xff] %vm509, %v1652
        %1675 = vst.msk [vmem:[#allocation3 + $0x10] sm:$0xff] %vm509, %v1654
        %1676 = vst.msk [vmem:[#allocation3 + $0x18] sm:$0xff] %vm509, %v1656
        %1677 = vst.msk [vmem:[#allocation3 + $0x20] sm:$0xff] %vm509, %v1658
        %1678 = vst.msk [vmem:[#allocation3 + $0x28] sm:$0xff] %vm509, %v1660
        %1679 = vst.msk [vmem:[#allocation3 + $0x30] sm:$0xff] %vm509, %v1662
        %1680 = vst.msk [vmem:[#allocation3 + $0x38] sm:$0xff] %vm509, %v1664
        %v1681 = vld [vmem:[%s395] sm:$0xff]
        %v1682 = vld [vmem:[%s395 + $0x10] sm:$0xff]
        %v1683 = vld [vmem:[%s395 + $0x20] sm:$0xff]
        %v1684 = vld [vmem:[%s395 + $0x30] sm:$0xff]
        %v1685 = vld [vmem:[%s395 + $0x40] sm:$0xff]
        %v1686 = vld [vmem:[%s395 + $0x50] sm:$0xff]
        %v1687 = vld [vmem:[%s395 + $0x60] sm:$0xff]
        %v1688 = vld [vmem:[%s395 + $0x70] sm:$0xff]
        %1697 = vrot.lane.b32.xlu0 %v1681, 24
        %v1698 = vpop.permute.xlu0 %1697
        %1699 = vrot.lane.b32.xlu0 %v1682, 24
        %v1700 = vpop.permute.xlu0 %1699
        %1701 = vrot.lane.b32.xlu0 %v1683, 24
        %v1702 = vpop.permute.xlu0 %1701
        %1703 = vrot.lane.b32.xlu0 %v1684, 24
        %v1704 = vpop.permute.xlu0 %1703
        %1705 = vrot.lane.b32.xlu0 %v1685, 24
        %v1706 = vpop.permute.xlu0 %1705
        %1707 = vrot.lane.b32.xlu0 %v1686, 24
        %v1708 = vpop.permute.xlu0 %1707
        %1709 = vrot.lane.b32.xlu0 %v1687, 24
        %v1710 = vpop.permute.xlu0 %1709
        %1711 = vrot.lane.b32.xlu0 %v1688, 24
        %v1712 = vpop.permute.xlu0 %1711
        %1721 = vst.msk [vmem:[#allocation3] sm:$0xff] %vm558, %v1698
        %1722 = vst.msk [vmem:[#allocation3 + $0x8] sm:$0xff] %vm558, %v1700
        %1723 = vst.msk [vmem:[#allocation3 + $0x10] sm:$0xff] %vm558, %v1702
        %1724 = vst.msk [vmem:[#allocation3 + $0x18] sm:$0xff] %vm558, %v1704
        %1725 = vst.msk [vmem:[#allocation3 + $0x20] sm:$0xff] %vm558, %v1706
        %1726 = vst.msk [vmem:[#allocation3 + $0x28] sm:$0xff] %vm558, %v1708
        %1727 = vst.msk [vmem:[#allocation3 + $0x30] sm:$0xff] %vm558, %v1710
        %1728 = vst.msk [vmem:[#allocation3 + $0x38] sm:$0xff] %vm558, %v1712
        %v1729 = vld [vmem:[%s395 + $0x1] sm:$0xff]
        %v1730 = vld [vmem:[%s395 + $0x11] sm:$0xff]
        %v1731 = vld [vmem:[%s395 + $0x21] sm:$0xff]
        %v1732 = vld [vmem:[%s395 + $0x31] sm:$0xff]
        %v1733 = vld [vmem:[%s395 + $0x41] sm:$0xff]
        %v1734 = vld [vmem:[%s395 + $0x51] sm:$0xff]
        %v1735 = vld [vmem:[%s395 + $0x61] sm:$0xff]
        %v1736 = vld [vmem:[%s395 + $0x71] sm:$0xff]
        %1745 = vrot.lane.b32.xlu0 %v1729, 32
        %v1746 = vpop.permute.xlu0 %1745
        %1747 = vrot.lane.b32.xlu0 %v1730, 32
        %v1748 = vpop.permute.xlu0 %1747
        %1749 = vrot.lane.b32.xlu0 %v1731, 32
        %v1750 = vpop.permute.xlu0 %1749
        %1751 = vrot.lane.b32.xlu0 %v1732, 32
        %v1752 = vpop.permute.xlu0 %1751
        %1753 = vrot.lane.b32.xlu0 %v1733, 32
        %v1754 = vpop.permute.xlu0 %1753
        %1755 = vrot.lane.b32.xlu0 %v1734, 32
        %v1756 = vpop.permute.xlu0 %1755
        %1757 = vrot.lane.b32.xlu0 %v1735, 32
        %v1758 = vpop.permute.xlu0 %1757
        %1759 = vrot.lane.b32.xlu0 %v1736, 32
        %v1760 = vpop.permute.xlu0 %1759
        %1769 = vst.msk [vmem:[#allocation3] sm:$0xff] %vm607, %v1746
        %1770 = vst.msk [vmem:[#allocation3 + $0x8] sm:$0xff] %vm607, %v1748
        %1771 = vst.msk [vmem:[#allocation3 + $0x10] sm:$0xff] %vm607, %v1750
        %1772 = vst.msk [vmem:[#allocation3 + $0x18] sm:$0xff] %vm607, %v1752
        %1773 = vst.msk [vmem:[#allocation3 + $0x20] sm:$0xff] %vm607, %v1754
        %1774 = vst.msk [vmem:[#allocation3 + $0x28] sm:$0xff] %vm607, %v1756
        %1775 = vst.msk [vmem:[#allocation3 + $0x30] sm:$0xff] %vm607, %v1758
        %1776 = vst.msk [vmem:[#allocation3 + $0x38] sm:$0xff] %vm607, %v1760
        %v1777 = vld [vmem:[%s395 + $0x2] sm:$0xff]
        %v1778 = vld [vmem:[%s395 + $0x12] sm:$0xff]
        %v1779 = vld [vmem:[%s395 + $0x22] sm:$0xff]
        %v1780 = vld [vmem:[%s395 + $0x32] sm:$0xff]
        %v1781 = vld [vmem:[%s395 + $0x42] sm:$0xff]
        %v1782 = vld [vmem:[%s395 + $0x52] sm:$0xff]
        %v1783 = vld [vmem:[%s395 + $0x62] sm:$0xff]
        %v1784 = vld [vmem:[%s395 + $0x72] sm:$0xff]
        %1793 = vrot.lane.b32.xlu0 %v1777, 40
        %v1794 = vpop.permute.xlu0 %1793
        %1795 = vrot.lane.b32.xlu0 %v1778, 40
        %v1796 = vpop.permute.xlu0 %1795
        %1797 = vrot.lane.b32.xlu0 %v1779, 40
        %v1798 = vpop.permute.xlu0 %1797
        %1799 = vrot.lane.b32.xlu0 %v1780, 40
        %v1800 = vpop.permute.xlu0 %1799
        %1801 = vrot.lane.b32.xlu0 %v1781, 40
        %v1802 = vpop.permute.xlu0 %1801
        %1803 = vrot.lane.b32.xlu0 %v1782, 40
        %v1804 = vpop.permute.xlu0 %1803
        %1805 = vrot.lane.b32.xlu0 %v1783, 40
        %v1806 = vpop.permute.xlu0 %1805
        %1807 = vrot.lane.b32.xlu0 %v1784, 40
        %v1808 = vpop.permute.xlu0 %1807
        %1817 = vst.msk [vmem:[#allocation3] sm:$0xff] %vm656, %v1794
        %1818 = vst.msk [vmem:[#allocation3 + $0x8] sm:$0xff] %vm656, %v1796
        %1819 = vst.msk [vmem:[#allocation3 + $0x10] sm:$0xff] %vm656, %v1798
        %1820 = vst.msk [vmem:[#allocation3 + $0x18] sm:$0xff] %vm656, %v1800
        %1821 = vst.msk [vmem:[#allocation3 + $0x20] sm:$0xff] %vm656, %v1802
        %1822 = vst.msk [vmem:[#allocation3 + $0x28] sm:$0xff] %vm656, %v1804
        %1823 = vst.msk [vmem:[#allocation3 + $0x30] sm:$0xff] %vm656, %v1806
        %1824 = vst.msk [vmem:[#allocation3 + $0x38] sm:$0xff] %vm656, %v1808
        %v1825 = vld [vmem:[%s665] sm:$0xff]
        %v1826 = vld [vmem:[%s665 + $0x10] sm:$0xff]
        %v1827 = vld [vmem:[%s665 + $0x20] sm:$0xff]
        %v1828 = vld [vmem:[%s665 + $0x30] sm:$0xff]
        %v1829 = vld [vmem:[%s665 + $0x40] sm:$0xff]
        %v1830 = vld [vmem:[%s665 + $0x50] sm:$0xff]
        %v1831 = vld [vmem:[%s665 + $0x60] sm:$0xff]
        %v1832 = vld [vmem:[%s665 + $0x70] sm:$0xff]
        %1841 = vrot.lane.b32.xlu0 %v1825, 48
        %v1842 = vpop.permute.xlu0 %1841
        %1843 = vrot.lane.b32.xlu0 %v1826, 48
        %v1844 = vpop.permute.xlu0 %1843
        %1845 = vrot.lane.b32.xlu0 %v1827, 48
        %v1846 = vpop.permute.xlu0 %1845
        %1847 = vrot.lane.b32.xlu0 %v1828, 48
        %v1848 = vpop.permute.xlu0 %1847
        %1849 = vrot.lane.b32.xlu0 %v1829, 48
        %v1850 = vpop.permute.xlu0 %1849
        %1851 = vrot.lane.b32.xlu0 %v1830, 48
        %v1852 = vpop.permute.xlu0 %1851
        %1853 = vrot.lane.b32.xlu0 %v1831, 48
        %v1854 = vpop.permute.xlu0 %1853
        %1855 = vrot.lane.b32.xlu0 %v1832, 48
        %v1856 = vpop.permute.xlu0 %1855
        %1865 = vst.msk [vmem:[#allocation3] sm:$0xff] %vm706, %v1842
        %1866 = vst.msk [vmem:[#allocation3 + $0x8] sm:$0xff] %vm706, %v1844
        %1867 = vst.msk [vmem:[#allocation3 + $0x10] sm:$0xff] %vm706, %v1846
        %1868 = vst.msk [vmem:[#allocation3 + $0x18] sm:$0xff] %vm706, %v1848
        %1869 = vst.msk [vmem:[#allocation3 + $0x20] sm:$0xff] %vm706, %v1850
        %1870 = vst.msk [vmem:[#allocation3 + $0x28] sm:$0xff] %vm706, %v1852
        %1871 = vst.msk [vmem:[#allocation3 + $0x30] sm:$0xff] %vm706, %v1854
        %1872 = vst.msk [vmem:[#allocation3 + $0x38] sm:$0xff] %vm706, %v1856
        %v1873 = vld [vmem:[%s665 + $0x1] sm:$0xff]
        %v1874 = vld [vmem:[%s665 + $0x11] sm:$0xff]
        %v1875 = vld [vmem:[%s665 + $0x21] sm:$0xff]
        %v1876 = vld [vmem:[%s665 + $0x31] sm:$0xff]
        %v1877 = vld [vmem:[%s665 + $0x41] sm:$0xff]
        %v1878 = vld [vmem:[%s665 + $0x51] sm:$0xff]
        %v1879 = vld [vmem:[%s665 + $0x61] sm:$0xff]
        %v1880 = vld [vmem:[%s665 + $0x71] sm:$0xff]
        %1889 = vrot.lane.b32.xlu0 %v1873, 56
        %v1890 = vpop.permute.xlu0 %1889
        %1891 = vrot.lane.b32.xlu0 %v1874, 56
        %v1892 = vpop.permute.xlu0 %1891
        %1893 = vrot.lane.b32.xlu0 %v1875, 56
        %v1894 = vpop.permute.xlu0 %1893
        %1895 = vrot.lane.b32.xlu0 %v1876, 56
        %v1896 = vpop.permute.xlu0 %1895
        %1897 = vrot.lane.b32.xlu0 %v1877, 56
        %v1898 = vpop.permute.xlu0 %1897
        %1899 = vrot.lane.b32.xlu0 %v1878, 56
        %v1900 = vpop.permute.xlu0 %1899
        %1901 = vrot.lane.b32.xlu0 %v1879, 56
        %v1902 = vpop.permute.xlu0 %1901
        %1903 = vrot.lane.b32.xlu0 %v1880, 56
        %v1904 = vpop.permute.xlu0 %1903
        %1913 = vst.msk [vmem:[#allocation3] sm:$0xff] %vm755, %v1890
        %1914 = vst.msk [vmem:[#allocation3 + $0x8] sm:$0xff] %vm755, %v1892
        %1915 = vst.msk [vmem:[#allocation3 + $0x10] sm:$0xff] %vm755, %v1894
        %1916 = vst.msk [vmem:[#allocation3 + $0x18] sm:$0xff] %vm755, %v1896
        %1917 = vst.msk [vmem:[#allocation3 + $0x20] sm:$0xff] %vm755, %v1898
        %1918 = vst.msk [vmem:[#allocation3 + $0x28] sm:$0xff] %vm755, %v1900
        %1919 = vst.msk [vmem:[#allocation3 + $0x30] sm:$0xff] %vm755, %v1902
        %1920 = vst.msk [vmem:[#allocation3 + $0x38] sm:$0xff] %vm755, %v1904
        %v1921 = vld [vmem:[%s665 + $0x2] sm:$0xff]
        %v1922 = vld [vmem:[%s665 + $0x12] sm:$0xff]
        %v1923 = vld [vmem:[%s665 + $0x22] sm:$0xff]
        %v1924 = vld [vmem:[%s665 + $0x32] sm:$0xff]
        %v1925 = vld [vmem:[%s665 + $0x42] sm:$0xff]
        %v1926 = vld [vmem:[%s665 + $0x52] sm:$0xff]
        %v1927 = vld [vmem:[%s665 + $0x62] sm:$0xff]
        %v1928 = vld [vmem:[%s665 + $0x72] sm:$0xff]
        %1937 = vrot.lane.b32.xlu0 %v1921, 64
        %v1938 = vpop.permute.xlu0 %1937
        %1939 = vrot.lane.b32.xlu0 %v1922, 64
        %v1940 = vpop.permute.xlu0 %1939
        %1941 = vrot.lane.b32.xlu0 %v1923, 64
        %v1942 = vpop.permute.xlu0 %1941
        %1943 = vrot.lane.b32.xlu0 %v1924, 64
        %v1944 = vpop.permute.xlu0 %1943
        %1945 = vrot.lane.b32.xlu0 %v1925, 64
        %v1946 = vpop.permute.xlu0 %1945
        %1947 = vrot.lane.b32.xlu0 %v1926, 64
        %v1948 = vpop.permute.xlu0 %1947
        %1949 = vrot.lane.b32.xlu0 %v1927, 64
        %v1950 = vpop.permute.xlu0 %1949
        %1951 = vrot.lane.b32.xlu0 %v1928, 64
        %v1952 = vpop.permute.xlu0 %1951
        %1961 = vst.msk [vmem:[#allocation3] sm:$0xff] %vm804, %v1938
        %1962 = vst.msk [vmem:[#allocation3 + $0x8] sm:$0xff] %vm804, %v1940
        %1963 = vst.msk [vmem:[#allocation3 + $0x10] sm:$0xff] %vm804, %v1942
        %1964 = vst.msk [vmem:[#allocation3 + $0x18] sm:$0xff] %vm804, %v1944
        %1965 = vst.msk [vmem:[#allocation3 + $0x20] sm:$0xff] %vm804, %v1946
        %1966 = vst.msk [vmem:[#allocation3 + $0x28] sm:$0xff] %vm804, %v1948
        %1967 = vst.msk [vmem:[#allocation3 + $0x30] sm:$0xff] %vm804, %v1950
        %1968 = vst.msk [vmem:[#allocation3 + $0x38] sm:$0xff] %vm804, %v1952
        %v1969 = vld [vmem:[#allocation3] sm:$0xff]
        %v1970 = vld [vmem:[#allocation3 + $0x8] sm:$0xff]
        %v1971 = vld [vmem:[#allocation3 + $0x10] sm:$0xff]
        %v1972 = vld [vmem:[#allocation3 + $0x18] sm:$0xff]
        %v1973 = vld [vmem:[#allocation3 + $0x20] sm:$0xff]
        %v1974 = vld [vmem:[#allocation3 + $0x28] sm:$0xff]
        %v1975 = vld [vmem:[#allocation3 + $0x30] sm:$0xff]
        %v1976 = vld [vmem:[#allocation3 + $0x38] sm:$0xff]
        %v1977 = vpack.c.bf16 %v1970, %v1969
        %v1978 = vpack.c.bf16 %v1972, %v1971
        %v1979 = vpack.c.bf16 %v1974, %v1973
        %v1980 = vpack.c.bf16 %v1976, %v1975
        %v1990 = vunpack.c.l.b16 %v1552
        %v1991 = vunpack.c.l.b16 %v1553
        %v1992 = vunpack.c.l.b16 %v1554
        %v1993 = vunpack.c.l.b16 %v1555
        %v1994 = vunpack.c.l.b16 %v1556
        %v1995 = vunpack.c.l.b16 %v1557
        %v1996 = vunpack.c.l.b16 %v1558
        %v1997 = vunpack.c.l.b16 %v1559
        %v1998 = vunpack.c.l.b16 %v1560
        %v1999 = vpack.c.b16 %v1991, %v1990
        %v2000 = vpack.c.b16 %v1993, %v1992
        %v2001 = vpack.c.b16 %v1995, %v1994
        %v2002 = vpack.c.b16 %v1997, %v1996
        %v2003 = vpack.c.b16 %v1998, %v1998
        %v2009 = vsel %vm852, %v1977, 0
        %v2012 = vsel %vm852, %v1978, 0
        %v2015 = vsel %vm852, %v1979, 0
        %v2018 = vsel %vm852, %v1980, 0
        %v2021 = vsel %vm865, %v2003, 0
        %2023 = vmatprep.subr.bf16.mxu0 0
        %2024 = vmatpush1.bf16.msra.mxu0 %v1999
        %2025 = vmatprep.subr.bf16.mxu0 0
        %2026 = vmatpush1.bf16.msra.mxu0 %v2000
        %2027 = vmatprep.subr.bf16.mxu0 0
        %2028 = vmatpush1.bf16.msra.mxu0 %v2001
        %2029 = vmatprep.subr.bf16.mxu0 0
        %2030 = vmatpush1.bf16.msra.mxu0 %v2002
        %2031 = vmatprep.subr.bf16.mxu0 0
        %2032 = vmatpush1.bf16.msra.mxu0 %v2021
        %2033 = vmatprep.subr.bf16.mxu0 0
        %2034 = vmatpush1.bf16.msra.mxu0 0
        %2035 = vmatprep.subr.bf16.mxu0 0
        %2036 = vmatpush1.bf16.msra.mxu0 0
        %2037 = vmatprep.subr.bf16.mxu0 0
        %2038 = vmatpush1.bf16.msra.mxu0 0
        %2039 = vmatprep.subr.bf16.mxu0 0
        %2040 = vmatpush1.bf16.msra.mxu0 0
        %2041 = vmatprep.subr.bf16.mxu0 0
        %2042 = vmatpush1.bf16.msra.mxu0 0
        %2043 = vmatprep.subr.bf16.mxu0 0
        %2044 = vmatpush1.bf16.msra.mxu0 0
        %2045 = vmatprep.subr.bf16.mxu0 0
        %2046 = vmatpush1.bf16.msra.mxu0 0
        %2047 = vmatprep.subr.bf16.mxu0 0
        %2048 = vmatpush1.bf16.msra.mxu0 0
        %2049 = vmatprep.subr.bf16.mxu0 0
        %2050 = vmatpush1.bf16.msra.mxu0 0
        %2051 = vmatprep.subr.bf16.mxu0 0
        %2052 = vmatpush1.bf16.msra.mxu0 0
        %2053 = vmatprep.subr.bf16.mxu0 0
        %2054 = vmatpush1.bf16.msra.mxu0 0
        %2055 = vmatprep.mubr.bf16.mxu0 0
        %2056 = vmatmul.mubr.bf16.gmra.mrb[0].mxu0 %v2009
        %v2057 = vpop.f32.mrb[0].mxu0
        %v2058 = vadd.f32 0.0, %v2057
        %v2059 = vpop.f32.mrb[0].mxu0
        %v2060 = vpop.f32.mrb[0].mxu0
        %v2061 = vadd.f32 0.0, %v2060
        %v2062 = vpop.f32.mrb[0].mxu0
        %2063 = vmatprep.mubr.bf16.mxu0 0
        %2064 = vmatmul.mubr.bf16.gmra.mrb[0].mxu0 %v2012
        %v2065 = vpop.f32.mrb[0].mxu0
        %v2066 = vadd.f32 0.0, %v2065
        %v2067 = vpop.f32.mrb[0].mxu0
        %v2068 = vpop.f32.mrb[0].mxu0
        %v2069 = vadd.f32 0.0, %v2068
        %v2070 = vpop.f32.mrb[0].mxu0
        %2071 = vmatprep.mubr.bf16.mxu0 0
        %2072 = vmatmul.mubr.bf16.gmra.mrb[0].mxu0 %v2015
        %v2073 = vpop.f32.mrb[0].mxu0
        %v2074 = vadd.f32 0.0, %v2073
        %v2075 = vpop.f32.mrb[0].mxu0
        %v2076 = vpop.f32.mrb[0].mxu0
        %v2077 = vadd.f32 0.0, %v2076
        %v2078 = vpop.f32.mrb[0].mxu0
        %2079 = vmatprep.mubr.bf16.mxu0 0
        %2080 = vmatmul.mubr.bf16.gmra.mrb[0].mxu0 %v2018
        %v2081 = vpop.f32.mrb[0].mxu0
        %v2082 = vadd.f32 0.0, %v2081
        %v2083 = vpop.f32.mrb[0].mxu0
        %v2084 = vpop.f32.mrb[0].mxu0
        %v2085 = vadd.f32 0.0, %v2084
        %v2086 = vpop.f32.mrb[0].mxu0
        %2087 = vdwg.mxu0
        %v2088 = vlaneseq
        %v2089 = vshrl.u32 %v2088, 7
        %v2090 = vsub.s32 4, %v2089
        %v2091 = vrot.slane %v197, %v2090
        %v2092 = vadd.f32 %v2058, %v2091
        %v2093 = vadd.f32 %v2061, %v2091
        %v2094 = vadd.f32 %v2066, %v2091
        %v2095 = vadd.f32 %v2069, %v2091
        %v2096 = vadd.f32 %v2074, %v2091
        %v2097 = vadd.f32 %v2077, %v2091
        %v2098 = vadd.f32 %v2082, %v2091
        %v2099 = vadd.f32 %v2085, %v2091
        %v2100 = vadd.f32 %v2092, %v986
        %v2101 = vadd.f32 %v2093, %v987
        %v2102 = vadd.f32 %v2094, %v988
        %v2103 = vadd.f32 %v2095, %v989
        %v2104 = vadd.f32 %v2096, %v990
        %v2105 = vadd.f32 %v2097, %v991
        %v2106 = vadd.f32 %v2098, %v992
        %v2107 = vadd.f32 %v2099, %v993
        %v2108 = vmax.f32 %v2100, 0.0
        %v2109 = vmax.f32 %v2101, 0.0
        %v2110 = vmax.f32 %v2102, 0.0
        %v2111 = vmax.f32 %v2103, 0.0
        %v2112 = vmax.f32 %v2104, 0.0
        %v2113 = vmax.f32 %v2105, 0.0
        %v2114 = vmax.f32 %v2106, 0.0
        %v2115 = vmax.f32 %v2107, 0.0
        %2116 = vst.msk [vmem:[%s190] sm:$0xff] %vm198, %v2108
        %2117 = vst.msk [vmem:[%s190 + $0x8] sm:$0xff] %vm198, %v2109
        %2118 = vst.msk [vmem:[%s190 + $0x10] sm:$0xff] %vm198, %v2110
        %2119 = vst.msk [vmem:[%s190 + $0x18] sm:$0xff] %vm198, %v2111
        %2120 = vst.msk [vmem:[%s190 + $0x20] sm:$0xff] %vm198, %v2112
        %2121 = vst.msk [vmem:[%s190 + $0x28] sm:$0xff] %vm198, %v2113
        %2122 = vst.msk [vmem:[%s190 + $0x30] sm:$0xff] %vm198, %v2114
        %2123 = vst.msk [vmem:[%s190 + $0x38] sm:$0xff] %vm198, %v2115
        %s2124 = sand.u32 %s115, 1
        %s2125 = scalar_lea.sflag [#allocation5], %s2124
        %s2126 = sand.u32 %s115, 1
        %s2127 = smul.addr %s2126, 64
        %s2128 = scalar_lea.vmem [#allocation4], %s2127
        // Predicated region
        $region37: #{encoder_forward.1} parent=35 // pred_check
          %p2129 = pneg %p125
        $region38: #{encoder_forward.1} parent=35 // pred_check_branch
          %2131 = sbr.rel (%p2129) target = $region40
        $region39: #{encoder_forward.1} parent=35 // pred_region
          %s2133 = ssub.s32 1024, 1024
          %2134 = vsyncadd %s2125, %s2133
          %s2135 = smul.addr %s18, 8
          %s2136 = smul.addr %s2135, 128
          %s2137 = scalar_lea.hbm %s4, %s2136
          %s2138 = sshll.u32 %s2128, 4
          %s2139 = int_to_ptr.vmem [resolvable:$true] %s2138
          %2144 = dma.vmem_to_hbm [thread:$0]  %s2139, 1024, %s2137, %s2125, 128, 128, 8
        $region40: #{encoder_forward.1} parent=35 // pred_fallthru
          _
      $region36: #{encoder_forward.1} parent=5 // pred_fallthru
        _
      %p2145 = scmp.le.s32.totalorder 2, %s13
      // Predicated region
      $region41: #{encoder_forward.1} parent=5 // pred_check
        %p2146 = pneg %p2145
      $region42: #{encoder_forward.1} parent=5 // pred_check_branch
        %2148 = sbr.rel (%p2146) target = $region44
      $region43: #{encoder_forward.1} parent=5 // pred_region
        %s2149 = ssub.s32 %s13, 2
        // Predicated region
        $region45: #{encoder_forward.1} parent=43 // pred_check
          %p2150 = pneg %p131
        $region46: #{encoder_forward.1} parent=43 // pred_check_branch
          %2152 = sbr.rel (%p2150) target = $region48
        $region47: #{encoder_forward.1} parent=43 // pred_region
          %s2153 = sand.u32 %s116, 1
          %s2154 = scalar_lea.sflag [#allocation5], %s2153
          %s2155 = sand.u32 %s116, 1
          %s2156 = smul.addr %s2155, 64
          %s2157 = scalar_lea.vmem [#allocation4], %s2156
          %2158 = dma.done %s2154, 1024
        $region48: #{encoder_forward.1} parent=43 // pred_fallthru
          _
      $region44: #{encoder_forward.1} parent=5 // pred_fallthru
        _
    $region6: #{encoder_forward.1} parent=1 // loop_footer
      %s17 = sadd.s32 1, %s13
    $region7: #{encoder_forward.1} parent=1 // loop_footer_branch
      %12 = sbr.rel target = $region3
    $region8: #{encoder_forward.1} parent=1 // loop_exit
      _
    %2159 = vsyncpa [#allocation5], 1
    %s2160 = scalar_lea.sflag [#allocation5], 1
    %2161 = vsyncpa %s2160, 1

</llo_original>
